<compile_context>
chip_gen: v7x
topology: tpu7x:2x2x1
jax: 0.10.0
libtpu: 0.0.40
codegen_flags: <defaults>
</compile_context>

<pallas_src>
import functools

import jax
import jax.numpy as jnp
from jax import lax
from jax.experimental import pallas as pl
from jax.experimental.pallas import tpu as pltpu

NUM_CLASSES = 4
NEG_POS_RATIO = 7
OVERLAP_THRESH = 0.35
VARIANCES = (0.1, 0.2)


# --------------------------- Pallas kernel (hot path) -----------------------
def _multibox_loss_kernel(loc_p_ref, loc_t_ref, lf_p_ref, lf_t_ref,
                          conf_ref, conf_t_ref, posc_ref, out_ref, *,
                          negpos_ratio, num_classes, n_bisect):
    # Per grid step (Bblk images):
    #   loc_p/loc_t : [Bblk, P, 4]   (native layout, priors on sublanes)
    #   lf_p/lf_t   : [Bblk, P, 10]
    #   conf        : [C, Bblk, P]   (lane-dense: priors on lanes)
    #   conf_t      : [Bblk, P]      int32 (lane-dense)
    #   posc        : [Bblk, P, 1]   f32 column-form positive mask
    #   out         : [1, 128]       lanes 0..3 = loss_l, loss_c, loss_coords, num_pos
    posc = posc_ref[...]                                   # [Bblk, P, 1]

    # ---- localization: smooth-L1 over positive priors, 'sum' reduction ----
    d = loc_p_ref[...] - loc_t_ref[...]                    # [Bblk, P, 4]
    ad = jnp.abs(d)
    sl1 = jnp.where(ad < 1.0, 0.5 * d * d, ad - 0.5)
    loss_l = jnp.sum(sl1 * posc)

    # ---- landmark coords: MSE over positive priors, 'sum' reduction ----
    d5 = lf_p_ref[...] - lf_t_ref[...]                     # [Bblk, P, 10]
    loss_coords = jnp.sum(d5 * d5 * posc)

    # ---- classification: unrolled C=4 lane-dense class rows ----
    conf_t = conf_t_ref[...]                               # [Bblk, P] int32
    pos = conf_t > 0                                       # NOTE: original module uses > 0
    posf = pos.astype(jnp.float32)
    rows = [conf_ref[k].astype(jnp.float32) for k in range(num_classes)]  # [Bblk, P]
    row_max = rows[0]
    for r in rows[1:]:
        row_max = jnp.maximum(row_max, r)
    sum_exp = jnp.zeros_like(row_max)
    conf_gt = jnp.zeros_like(row_max)
    for k in range(num_classes):
        sum_exp = sum_exp + jnp.exp(rows[k] - row_max)
        conf_gt = conf_gt + jnp.where(conf_t == k, rows[k], 0.0)
    lse_row = jnp.log(sum_exp) + row_max                   # per-row logsumexp
    ce = lse_row - conf_gt                                 # [Bblk, P], >= 0
    loss_mine = jnp.where(pos, 0.0, ce)                    # positives zeroed

    # ---- hard-negative mining: top-k sum via per-image threshold search ----
    # rank-based selection sums the num_neg largest loss_mine values; that sum
    # is tie-invariant, so a threshold search with the (k - count_above) * thr
    # correction reproduces it exactly (up to bisection epsilon ~1e-7).
    P = loss_mine.shape[-1]
    num_pos_img = jnp.sum(posf, axis=-1, keepdims=True)               # [Bblk, 1]
    k_img = jnp.minimum(negpos_ratio * num_pos_img, float(P - 1))     # clamp max=P-1
    hi0 = jnp.max(loss_mine, axis=-1, keepdims=True)                  # [Bblk, 1]
    lo0 = jnp.zeros_like(hi0)

    def bisect(_, carry):
        lo, hi = carry
        mid = 0.5 * (lo + hi)
        cnt = jnp.sum(jnp.where(loss_mine > mid, 1.0, 0.0),
                      axis=-1, keepdims=True)                         # [Bblk, 1]
        up = cnt >= k_img
        return jnp.where(up, mid, lo), jnp.where(up, hi, mid)

    thr, _ = lax.fori_loop(0, n_bisect, bisect, (lo0, hi0), unroll=True)
    above = jnp.where(loss_mine > thr, 1.0, 0.0)                      # [Bblk, P]
    cnt_above = jnp.sum(above, axis=-1, keepdims=True)                # [Bblk, 1]
    sum_above = jnp.sum(loss_mine * above, axis=-1, keepdims=True)    # [Bblk, 1]
    neg_loss = sum_above + (k_img - cnt_above) * thr                  # tie-exact
    loss_c = jnp.sum(ce * posf) + jnp.sum(neg_loss)
    num_pos = jnp.sum(posf)

    # ---- lane-dense per-step partial sums into lanes 0..3 of (1, 128) ----
    lane = lax.broadcasted_iota(jnp.int32, (1, 128), 1)
    out_ref[...] = (jnp.where(lane == 0, loss_l, 0.0)
                    + jnp.where(lane == 1, loss_c, 0.0)
                    + jnp.where(lane == 2, loss_coords, 0.0)
                    + jnp.where(lane == 3, num_pos, 0.0))


def _pick_block_batch(B, bytes_per_image, budget=6 << 20):
    # Images per grid step.  Bblk must be a multiple of 8 or equal to B so the
    # lane-dense conf block's second-to-last dim satisfies the (8,128) rule.
    # Keep the (double-buffered) block under ~budget so it fits every
    # generation's default scoped VMEM (v5e 16 MiB / v7x 32 MiB).
    if B % 8 == 0:
        for cand in (64, 32, 16, 8):
            if B % cand == 0 and cand * bytes_per_image <= budget and B // cand >= 2:
                return cand
        return 8
    return B
    # TODO(synk): for very large prior counts (P ~ 16.8k) a production kernel
    # would additionally tile P inside the grid; not needed at these shapes.


def multibox_loss_pallas(loc_data, conf_data, loc_five_data,
                         loc_t, conf_t, loc_five_t,
                         negpos_ratio=NEG_POS_RATIO):
    B, P, C = conf_data.shape
    # Only conf goes lane-dense (priors on lanes); loc / landmarks stay native.
    conf_cbp = jnp.transpose(conf_data, (2, 0, 1))        # [C, B, P]
    conf_t_i = conf_t.astype(jnp.int32)                   # [B, P]
    conf_t_1bp = conf_t_i[None, :, :]                     # [1, B, P]
    pos_col = (conf_t_i > 0).astype(jnp.float32)[:, :, None]   # [B, P, 1]

    bytes_per_image = P * 34 * 4   # loc 8 + landm 20 + conf 4 + conf_t 1 + mask 1 (f32)
    Bblk = _pick_block_batch(B, bytes_per_image)
    G = B // Bblk
    vmem_limit = int(min(64 << 20, max(16 << 20, 4 * Bblk * bytes_per_image)))

    kernel = functools.partial(_multibox_loss_kernel,
                               negpos_ratio=float(negpos_ratio),
                               num_classes=C, n_bisect=32)

    partial = pl.pallas_call(
        kernel,
        out_shape=jax.ShapeDtypeStruct((G, 1, 128), jnp.float32),
        grid=(G,),
        in_specs=[
            pl.BlockSpec((Bblk, P, 4), lambda g: (g, 0, 0)),      # loc_p
            pl.BlockSpec((Bblk, P, 4), lambda g: (g, 0, 0)),      # loc_t
            pl.BlockSpec((Bblk, P, 10), lambda g: (g, 0, 0)),     # landm_p
            pl.BlockSpec((Bblk, P, 10), lambda g: (g, 0, 0)),     # landm_t
            pl.BlockSpec((C, Bblk, P), lambda g: (0, g, 0)),      # conf (lane-dense)
            pl.BlockSpec((None, Bblk, P), lambda g: (0, g, 0)),   # conf_t -> [Bblk, P]
            pl.BlockSpec((Bblk, P, 1), lambda g: (g, 0, 0)),      # column pos mask
        ],
        out_specs=pl.BlockSpec((None, 1, 128), lambda g: (g, 0, 0)),
        compiler_params=pltpu.CompilerParams(
            dimension_semantics=("parallel",),
            vmem_limit_bytes=vmem_limit),
    )(loc_data, loc_t, loc_five_data, loc_five_t, conf_cbp, conf_t_1bp, pos_col)

    sums = jnp.sum(partial[:, 0, :4], axis=0)     # [loss_l, loss_c, loss_coords, num_pos]
    n = jnp.maximum(sums[3], 1.0)
    return sums[0] / n, sums[1] / n, sums[2] / n


# ----------------------- matching glue (plain JAX) --------------------------
# TODO(synk): `match_` is defined outside the module (variable num_objs,
# argmax scatter); standard SSD/RetinaFace bipartite matching + encode is
# implemented here as plain-JAX glue rather than inside the Pallas kernel.
def _point_form(boxes):
    return jnp.concatenate([boxes[:, :2] - boxes[:, 2:] / 2,
                            boxes[:, :2] + boxes[:, 2:] / 2], axis=1)


def _jaccard(box_a, box_b):
    max_xy = jnp.minimum(box_a[:, None, 2:], box_b[None, :, 2:])
    min_xy = jnp.maximum(box_a[:, None, :2], box_b[None, :, :2])
    wh = jnp.maximum(max_xy - min_xy, 0.0)
    inter = wh[..., 0] * wh[..., 1]
    area_a = ((box_a[:, 2] - box_a[:, 0]) * (box_a[:, 3] - box_a[:, 1]))[:, None]
    area_b = ((box_b[:, 2] - box_b[:, 0]) * (box_b[:, 3] - box_b[:, 1]))[None, :]
    return inter / (area_a + area_b - inter)


def _encode(matched, priors, variances):
    g_cxcy = (matched[:, :2] + matched[:, 2:]) / 2 - priors[:, :2]
    g_cxcy = g_cxcy / (variances[0] * priors[:, 2:])
    g_wh = (matched[:, 2:] - matched[:, :2]) / priors[:, 2:]
    g_wh = jnp.log(g_wh) / variances[1]
    return jnp.concatenate([g_cxcy, g_wh], axis=1)


def _encode_landm(matched, priors, variances):
    m = matched.reshape(-1, 5, 2)
    g = (m - priors[:, None, :2]) / (variances[0] * priors[:, None, 2:])
    return g.reshape(-1, 10)


def _match(threshold, truths, truths_five, priors, variances, labels):
    overlaps = _jaccard(truths, _point_form(priors))           # [n_obj, P]
    best_prior_idx = jnp.argmax(overlaps, axis=1)              # [n_obj]
    best_truth_overlap = jnp.max(overlaps, axis=0)             # [P]
    best_truth_idx = jnp.argmax(overlaps, axis=0)              # [P]
    best_truth_overlap = best_truth_overlap.at[best_prior_idx].set(2.0)
    best_truth_idx = best_truth_idx.at[best_prior_idx].set(
        jnp.arange(truths.shape[0]))
    matches = truths[best_truth_idx]
    matches_five = truths_five[best_truth_idx]
    conf = labels[best_truth_idx].astype(jnp.int32)
    conf = jnp.where(best_truth_overlap < threshold, 0, conf)
    loc = _encode(matches, priors, variances)
    loc_five = _encode_landm(matches_five, priors, variances)
    return loc, conf, loc_five


# ------------------------- pure-JAX reference (check) -----------------------
def multibox_loss_reference(loc_data, conf_data, loc_five_data,
                            loc_t, conf_t, loc_five_t,
                            negpos_ratio=NEG_POS_RATIO):
    pos = conf_t > 0
    posf = pos.astype(jnp.float32)
    d = loc_data - loc_t
    ad = jnp.abs(d)
    loss_l = jnp.sum(jnp.where(ad < 1.0, 0.5 * d * d, ad - 0.5) * posf[:, :, None])
    d5 = loc_five_data - loc_five_t
    loss_coords = jnp.sum(d5 * d5 * posf[:, :, None])
    B, P, C = conf_data.shape
    conf_gt = jnp.take_along_axis(conf_data, conf_t[:, :, None], axis=2)[..., 0]
    lse_row = jax.nn.logsumexp(conf_data, axis=-1)
    loss_c_all = jnp.where(pos, 0.0, lse_row - conf_gt)
    li = loss_c_all[:, :, None]
    lj = loss_c_all[:, None, :]
    i_iota = jnp.arange(P)[None, :, None]
    j_iota = jnp.arange(P)[None, None, :]
    higher = (lj > li) | ((lj == li) & (j_iota < i_iota))
    rank = jnp.sum(higher.astype(jnp.int32), axis=2)
    num_pos = jnp.sum(pos.astype(jnp.int32), axis=1, keepdims=True)
    num_neg = jnp.minimum(negpos_ratio * num_pos, P - 1)
    sel = (pos | (rank < num_neg)).astype(jnp.float32)
    loss_c = jnp.sum((lse_row - conf_gt) * sel)
    n = jnp.maximum(jnp.sum(num_pos).astype(jnp.float32), 1.0)
    return loss_l / n, loss_c / n, loss_coords / n


# ---------------------------------- main -------------------------------------
if __name__ == "__main__":
    B, P, C, n_obj = 2, 128, NUM_CLASSES, 3
    key = jax.random.PRNGKey(0)
    k = jax.random.split(key, 8)

    # priors: 16x8 grid of centers, fixed size (center-form, like SSD priors)
    cx = (jnp.arange(P, dtype=jnp.float32) % 16 + 0.5) / 16.0
    cy = (jnp.arange(P, dtype=jnp.float32) // 16 + 0.5) / 8.0
    priors = jnp.stack(
        [cx, cy, jnp.full((P,), 0.15), jnp.full((P,), 0.2)], axis=1)

    # synthetic ground truth: boxes (corner form), labels in 1..C-1, 10 landmarks
    centers = jax.random.uniform(k[0], (B, n_obj, 2), minval=0.2, maxval=0.8)
    sizes = jax.random.uniform(k[1], (B, n_obj, 2), minval=0.1, maxval=0.3)
    gt_boxes = jnp.concatenate([centers - sizes / 2, centers + sizes / 2], axis=-1)
    gt_labels = jax.random.randint(k[2], (B, n_obj), 1, C)
    gt_landms = jax.random.uniform(k[3], (B, n_obj, 10))

    # "network" predictions: loc [B,P,4], conf [B,P,C], loc_five [B,P,10]
    loc_data = 0.1 * jax.random.normal(k[4], (B, P, 4), dtype=jnp.float32)
    conf_data = jax.random.normal(k[5], (B, P, C), dtype=jnp.float32)
    loc_five_data = 0.1 * jax.random.normal(k[6], (B, P, 10), dtype=jnp.float32)

    # matching (glue; fixed n_obj so vmap over the batch works)
    loc_t, conf_t, loc_five_t = jax.vmap(
        lambda t, tf, l: _match(OVERLAP_THRESH, t, tf, priors, VARIANCES, l)
    )(gt_boxes, gt_landms, gt_labels)
    conf_t = conf_t.astype(jnp.int32)

    loss_l, loss_c, loss_coords = multibox_loss_pallas(
        loc_data, conf_data, loc_five_data, loc_t, conf_t, loc_five_t)
    jax.block_until_ready((loss_l, loss_c, loss_coords))

    ref = multibox_loss_reference(
        loc_data, conf_data, loc_five_data, loc_t, conf_t, loc_five_t)

    ok = True
    for a, r in zip((loss_l, loss_c, loss_coords), ref):
        a_f, r_f = float(a), float(r)
        if not (jnp.isfinite(a) and abs(a_f - r_f) <= 1e-3 + 1e-3 * abs(r_f)):
            ok = False
    if ok:
        print("KERNEL_OK")
    else:
        print("MISMATCH",
              (float(loss_l), float(loss_c), float(loss_coords)),
              tuple(float(r) for r in ref))
</pallas_src>

<mosaic_0001>
module attributes {stable_mosaic.version = 11 : i64} {
  func.func @_multibox_loss_kernel(%arg0: i32, %arg1: memref<2x128x4xf32, #tpu.memory_space<vmem>>, %arg2: memref<2x128x4xf32, #tpu.memory_space<vmem>>, %arg3: memref<2x128x10xf32, #tpu.memory_space<vmem>>, %arg4: memref<2x128x10xf32, #tpu.memory_space<vmem>>, %arg5: memref<4x2x128xf32, #tpu.memory_space<vmem>>, %arg6: memref<1x2x128xi32, #tpu.memory_space<vmem>>, %arg7: memref<2x128x1xf32, #tpu.memory_space<vmem>>, %arg8: memref<1x1x128xf32, #tpu.memory_space<vmem>>) attributes {dimension_semantics = [#tpu.dimension_semantics<parallel>], iteration_bounds = array<i64: 1>, scalar_prefetch = 0 : i64, scratch_operands = 0 : i64, tpu.core_type = #tpu.core_type<tc>, window_params = [{transform_indices = @transform_0, window_bounds = array<i64: 2, 128, 4>}, {transform_indices = @transform_1, window_bounds = array<i64: 2, 128, 4>}, {transform_indices = @transform_2, window_bounds = array<i64: 2, 128, 10>}, {transform_indices = @transform_3, window_bounds = array<i64: 2, 128, 10>}, {transform_indices = @transform_4, window_bounds = array<i64: 4, 2, 128>}, {transform_indices = @transform_5, window_bounds = array<i64: 1, 2, 128>}, {transform_indices = @transform_6, window_bounds = array<i64: 2, 128, 1>}, {transform_indices = @transform_7, window_bounds = array<i64: 1, 1, 128>}]} {
    %c0 = arith.constant 0 : index
    %c0_0 = arith.constant 0 : index
    %c0_1 = arith.constant 0 : index
    %0 = vector.load %arg7[%c0, %c0_0, %c0_1] : memref<2x128x1xf32, #tpu.memory_space<vmem>>, vector<2x128x1xf32>
    %c0_2 = arith.constant 0 : index
    %c0_3 = arith.constant 0 : index
    %c0_4 = arith.constant 0 : index
    %1 = vector.load %arg1[%c0_2, %c0_3, %c0_4] : memref<2x128x4xf32, #tpu.memory_space<vmem>>, vector<2x128x4xf32>
    %c0_5 = arith.constant 0 : index
    %c0_6 = arith.constant 0 : index
    %c0_7 = arith.constant 0 : index
    %2 = vector.load %arg2[%c0_5, %c0_6, %c0_7] : memref<2x128x4xf32, #tpu.memory_space<vmem>>, vector<2x128x4xf32>
    %3 = arith.subf %1, %2 : vector<2x128x4xf32>
    %4 = math.absf %3 : vector<2x128x4xf32>
    %cst = arith.constant 1.000000e+00 : f32
    %5 = vector.broadcast %cst : f32 to vector<2x128x4xf32>
    %6 = arith.cmpf olt, %4, %5 : vector<2x128x4xf32>
    %cst_8 = arith.constant 5.000000e-01 : f32
    %7 = vector.broadcast %cst_8 : f32 to vector<2x128x4xf32>
    %8 = arith.mulf %7, %3 : vector<2x128x4xf32>
    %9 = arith.mulf %8, %3 : vector<2x128x4xf32>
    %cst_9 = arith.constant 5.000000e-01 : f32
    %10 = vector.broadcast %cst_9 : f32 to vector<2x128x4xf32>
    %11 = arith.subf %4, %10 : vector<2x128x4xf32>
    %12 = arith.select %6, %9, %11 : vector<2x128x4xi1>, vector<2x128x4xf32>
    %13 = vector.broadcast %0 : vector<2x128x1xf32> to vector<2x128x4xf32>
    %14 = arith.mulf %12, %13 : vector<2x128x4xf32>
    %15 = vector.shape_cast %14 : vector<2x128x4xf32> to vector<1x2x128x4xf32>
    %cst_10 = arith.constant dense<0.000000e+00> : vector<1xf32>
    %16 = vector.multi_reduction <add>, %15, %cst_10 [1, 2, 3] : vector<1x2x128x4xf32> to vector<1xf32>
    %17 = vector.shape_cast %16 : vector<1xf32> to vector<1x1x1x1xf32>
    %18 = vector.extract %17[0, 0, 0, 0] : f32 from vector<1x1x1x1xf32>
    %c0_11 = arith.constant 0 : index
    %c0_12 = arith.constant 0 : index
    %c0_13 = arith.constant 0 : index
    %19 = vector.load %arg3[%c0_11, %c0_12, %c0_13] : memref<2x128x10xf32, #tpu.memory_space<vmem>>, vector<2x128x10xf32>
    %c0_14 = arith.constant 0 : index
    %c0_15 = arith.constant 0 : index
    %c0_16 = arith.constant 0 : index
    %20 = vector.load %arg4[%c0_14, %c0_15, %c0_16] : memref<2x128x10xf32, #tpu.memory_space<vmem>>, vector<2x128x10xf32>
    %21 = arith.subf %19, %20 : vector<2x128x10xf32>
    %22 = arith.mulf %21, %21 : vector<2x128x10xf32>
    %23 = vector.broadcast %0 : vector<2x128x1xf32> to vector<2x128x10xf32>
    %24 = arith.mulf %22, %23 : vector<2x128x10xf32>
    %25 = vector.shape_cast %24 : vector<2x128x10xf32> to vector<1x2x128x10xf32>
    %cst_17 = arith.constant dense<0.000000e+00> : vector<1xf32>
    %26 = vector.multi_reduction <add>, %25, %cst_17 [1, 2, 3] : vector<1x2x128x10xf32> to vector<1xf32>
    %27 = vector.shape_cast %26 : vector<1xf32> to vector<1x1x1x1xf32>
    %28 = vector.extract %27[0, 0, 0, 0] : f32 from vector<1x1x1x1xf32>
    %c0_18 = arith.constant 0 : index
    %c0_19 = arith.constant 0 : index
    %c0_20 = arith.constant 0 : index
    %29 = vector.load %arg6[%c0_18, %c0_19, %c0_20] : memref<1x2x128xi32, #tpu.memory_space<vmem>>, vector<1x2x128xi32>
    %30 = vector.shape_cast %29 : vector<1x2x128xi32> to vector<2x128xi32>
    %c0_i32 = arith.constant 0 : i32
    %31 = vector.broadcast %c0_i32 : i32 to vector<2x128xi32>
    %32 = arith.cmpi sgt, %30, %31 : vector<2x128xi32>
    %33 = arith.extui %32 : vector<2x128xi1> to vector<2x128xi32>
    %34 = arith.sitofp %33 : vector<2x128xi32> to vector<2x128xf32>
    %c0_21 = arith.constant 0 : index
    %c0_22 = arith.constant 0 : index
    %c0_23 = arith.constant 0 : index
    %35 = vector.load %arg5[%c0_21, %c0_22, %c0_23] : memref<4x2x128xf32, #tpu.memory_space<vmem>>, vector<1x2x128xf32>
    %36 = vector.shape_cast %35 : vector<1x2x128xf32> to vector<2x128xf32>
    %c1 = arith.constant 1 : index
    %c0_24 = arith.constant 0 : index
    %c0_25 = arith.constant 0 : index
    %37 = vector.load %arg5[%c1, %c0_24, %c0_25] : memref<4x2x128xf32, #tpu.memory_space<vmem>>, vector<1x2x128xf32>
    %38 = vector.shape_cast %37 : vector<1x2x128xf32> to vector<2x128xf32>
    %c2 = arith.constant 2 : index
    %c0_26 = arith.constant 0 : index
    %c0_27 = arith.constant 0 : index
    %39 = vector.load %arg5[%c2, %c0_26, %c0_27] : memref<4x2x128xf32, #tpu.memory_space<vmem>>, vector<1x2x128xf32>
    %40 = vector.shape_cast %39 : vector<1x2x128xf32> to vector<2x128xf32>
    %c3 = arith.constant 3 : index
    %c0_28 = arith.constant 0 : index
    %c0_29 = arith.constant 0 : index
    %41 = vector.load %arg5[%c3, %c0_28, %c0_29] : memref<4x2x128xf32, #tpu.memory_space<vmem>>, vector<1x2x128xf32>
    %42 = vector.shape_cast %41 : vector<1x2x128xf32> to vector<2x128xf32>
    %43 = arith.maximumf %36, %38 : vector<2x128xf32>
    %44 = arith.maximumf %43, %40 : vector<2x128xf32>
    %45 = arith.maximumf %44, %42 : vector<2x128xf32>
    %cst_30 = arith.constant 0.000000e+00 : f32
    %46 = vector.broadcast %cst_30 : f32 to vector<2x128xf32>
    %cst_31 = arith.constant 0.000000e+00 : f32
    %47 = vector.broadcast %cst_31 : f32 to vector<2x128xf32>
    %48 = arith.subf %36, %45 : vector<2x128xf32>
    %49 = math.exp %48 : vector<2x128xf32>
    %50 = arith.addf %46, %49 : vector<2x128xf32>
    %c0_i32_32 = arith.constant 0 : i32
    %51 = vector.broadcast %c0_i32_32 : i32 to vector<2x128xi32>
    %52 = arith.cmpi eq, %30, %51 : vector<2x128xi32>
    %cst_33 = arith.constant 0.000000e+00 : f32
    %53 = vector.broadcast %cst_33 : f32 to vector<2x128xf32>
    %54 = arith.select %52, %36, %53 : vector<2x128xi1>, vector<2x128xf32>
    %55 = arith.addf %47, %54 : vector<2x128xf32>
    %56 = arith.subf %38, %45 : vector<2x128xf32>
    %57 = math.exp %56 : vector<2x128xf32>
    %58 = arith.addf %50, %57 : vector<2x128xf32>
    %c1_i32 = arith.constant 1 : i32
    %59 = vector.broadcast %c1_i32 : i32 to vector<2x128xi32>
    %60 = arith.cmpi eq, %30, %59 : vector<2x128xi32>
    %cst_34 = arith.constant 0.000000e+00 : f32
    %61 = vector.broadcast %cst_34 : f32 to vector<2x128xf32>
    %62 = arith.select %60, %38, %61 : vector<2x128xi1>, vector<2x128xf32>
    %63 = arith.addf %55, %62 : vector<2x128xf32>
    %64 = arith.subf %40, %45 : vector<2x128xf32>
    %65 = math.exp %64 : vector<2x128xf32>
    %66 = arith.addf %58, %65 : vector<2x128xf32>
    %c2_i32 = arith.constant 2 : i32
    %67 = vector.broadcast %c2_i32 : i32 to vector<2x128xi32>
    %68 = arith.cmpi eq, %30, %67 : vector<2x128xi32>
    %cst_35 = arith.constant 0.000000e+00 : f32
    %69 = vector.broadcast %cst_35 : f32 to vector<2x128xf32>
    %70 = arith.select %68, %40, %69 : vector<2x128xi1>, vector<2x128xf32>
    %71 = arith.addf %63, %70 : vector<2x128xf32>
    %72 = arith.subf %42, %45 : vector<2x128xf32>
    %73 = math.exp %72 : vector<2x128xf32>
    %74 = arith.addf %66, %73 : vector<2x128xf32>
    %c3_i32 = arith.constant 3 : i32
    %75 = vector.broadcast %c3_i32 : i32 to vector<2x128xi32>
    %76 = arith.cmpi eq, %30, %75 : vector<2x128xi32>
    %cst_36 = arith.constant 0.000000e+00 : f32
    %77 = vector.broadcast %cst_36 : f32 to vector<2x128xf32>
    %78 = arith.select %76, %42, %77 : vector<2x128xi1>, vector<2x128xf32>
    %79 = arith.addf %71, %78 : vector<2x128xf32>
    %80 = math.log %74 : vector<2x128xf32>
    %81 = arith.addf %80, %45 : vector<2x128xf32>
    %82 = arith.subf %81, %79 : vector<2x128xf32>
    %cst_37 = arith.constant 0.000000e+00 : f32
    %83 = vector.broadcast %cst_37 : f32 to vector<2x128xf32>
    %84 = arith.select %32, %83, %82 : vector<2x128xi1>, vector<2x128xf32>
    %cst_38 = arith.constant dense<0.000000e+00> : vector<2xf32>
    %85 = vector.multi_reduction <add>, %34, %cst_38 [1] : vector<2x128xf32> to vector<2xf32>
    %86 = vector.shape_cast %85 : vector<2xf32> to vector<2x1xf32>
    %cst_39 = arith.constant 7.000000e+00 : f32
    %87 = vector.broadcast %cst_39 : f32 to vector<2x1xf32>
    %88 = arith.mulf %87, %86 : vector<2x1xf32>
    %cst_40 = arith.constant 1.270000e+02 : f32
    %89 = vector.broadcast %cst_40 : f32 to vector<2x1xf32>
    %90 = arith.minimumf %88, %89 : vector<2x1xf32>
    %cst_41 = arith.constant dense<0xFF800000> : vector<2xf32>
    %91 = vector.multi_reduction <maximumf>, %84, %cst_41 [1] : vector<2x128xf32> to vector<2xf32>
    %92 = vector.shape_cast %91 : vector<2xf32> to vector<2x1xf32>
    %cst_42 = arith.constant 0.000000e+00 : f32
    %93 = vector.broadcast %cst_42 : f32 to vector<2x1xf32>
    %c0_i32_43 = arith.constant 0 : i32
    %94 = arith.addf %93, %92 : vector<2x1xf32>
    %cst_44 = arith.constant 5.000000e-01 : f32
    %95 = vector.broadcast %cst_44 : f32 to vector<2x1xf32>
    %96 = arith.mulf %95, %94 : vector<2x1xf32>
    %97 = vector.broadcast %96 : vector<2x1xf32> to vector<2x128xf32>
    %98 = arith.cmpf ogt, %84, %97 : vector<2x128xf32>
    %cst_45 = arith.constant 1.000000e+00 : f32
    %cst_46 = arith.constant 0.000000e+00 : f32
    %99 = vector.broadcast %cst_45 : f32 to vector<2x128xf32>
    %100 = vector.broadcast %cst_46 : f32 to vector<2x128xf32>
    %101 = arith.select %98, %99, %100 : vector<2x128xi1>, vector<2x128xf32>
    %cst_47 = arith.constant dense<0.000000e+00> : vector<2xf32>
    %102 = vector.multi_reduction <add>, %101, %cst_47 [1] : vector<2x128xf32> to vector<2xf32>
    %103 = vector.shape_cast %102 : vector<2xf32> to vector<2x1xf32>
    %104 = arith.cmpf oge, %103, %90 : vector<2x1xf32>
    %105 = arith.select %104, %96, %93 : vector<2x1xi1>, vector<2x1xf32>
    %106 = arith.select %104, %92, %96 : vector<2x1xi1>, vector<2x1xf32>
    %c1_i32_48 = arith.constant 1 : i32
    %107 = arith.addf %105, %106 : vector<2x1xf32>
    %cst_49 = arith.constant 5.000000e-01 : f32
    %108 = vector.broadcast %cst_49 : f32 to vector<2x1xf32>
    %109 = arith.mulf %108, %107 : vector<2x1xf32>
    %110 = vector.broadcast %109 : vector<2x1xf32> to vector<2x128xf32>
    %111 = arith.cmpf ogt, %84, %110 : vector<2x128xf32>
    %cst_50 = arith.constant 1.000000e+00 : f32
    %cst_51 = arith.constant 0.000000e+00 : f32
    %112 = vector.broadcast %cst_50 : f32 to vector<2x128xf32>
    %113 = vector.broadcast %cst_51 : f32 to vector<2x128xf32>
    %114 = arith.select %111, %112, %113 : vector<2x128xi1>, vector<2x128xf32>
    %cst_52 = arith.constant dense<0.000000e+00> : vector<2xf32>
    %115 = vector.multi_reduction <add>, %114, %cst_52 [1] : vector<2x128xf32> to vector<2xf32>
    %116 = vector.shape_cast %115 : vector<2xf32> to vector<2x1xf32>
    %117 = arith.cmpf oge, %116, %90 : vector<2x1xf32>
    %118 = arith.select %117, %109, %105 : vector<2x1xi1>, vector<2x1xf32>
    %119 = arith.select %117, %106, %109 : vector<2x1xi1>, vector<2x1xf32>
    %c2_i32_53 = arith.constant 2 : i32
    %120 = arith.addf %118, %119 : vector<2x1xf32>
    %cst_54 = arith.constant 5.000000e-01 : f32
    %121 = vector.broadcast %cst_54 : f32 to vector<2x1xf32>
    %122 = arith.mulf %121, %120 : vector<2x1xf32>
    %123 = vector.broadcast %122 : vector<2x1xf32> to vector<2x128xf32>
    %124 = arith.cmpf ogt, %84, %123 : vector<2x128xf32>
    %cst_55 = arith.constant 1.000000e+00 : f32
    %cst_56 = arith.constant 0.000000e+00 : f32
    %125 = vector.broadcast %cst_55 : f32 to vector<2x128xf32>
    %126 = vector.broadcast %cst_56 : f32 to vector<2x128xf32>
    %127 = arith.select %124, %125, %126 : vector<2x128xi1>, vector<2x128xf32>
    %cst_57 = arith.constant dense<0.000000e+00> : vector<2xf32>
    %128 = vector.multi_reduction <add>, %127, %cst_57 [1] : vector<2x128xf32> to vector<2xf32>
    %129 = vector.shape_cast %128 : vector<2xf32> to vector<2x1xf32>
    %130 = arith.cmpf oge, %129, %90 : vector<2x1xf32>
    %131 = arith.select %130, %122, %118 : vector<2x1xi1>, vector<2x1xf32>
    %132 = arith.select %130, %119, %122 : vector<2x1xi1>, vector<2x1xf32>
    %c3_i32_58 = arith.constant 3 : i32
    %133 = arith.addf %131, %132 : vector<2x1xf32>
    %cst_59 = arith.constant 5.000000e-01 : f32
    %134 = vector.broadcast %cst_59 : f32 to vector<2x1xf32>
    %135 = arith.mulf %134, %133 : vector<2x1xf32>
    %136 = vector.broadcast %135 : vector<2x1xf32> to vector<2x128xf32>
    %137 = arith.cmpf ogt, %84, %136 : vector<2x128xf32>
    %cst_60 = arith.constant 1.000000e+00 : f32
    %cst_61 = arith.constant 0.000000e+00 : f32
    %138 = vector.broadcast %cst_60 : f32 to vector<2x128xf32>
    %139 = vector.broadcast %cst_61 : f32 to vector<2x128xf32>
    %140 = arith.select %137, %138, %139 : vector<2x128xi1>, vector<2x128xf32>
    %cst_62 = arith.constant dense<0.000000e+00> : vector<2xf32>
    %141 = vector.multi_reduction <add>, %140, %cst_62 [1] : vector<2x128xf32> to vector<2xf32>
    %142 = vector.shape_cast %141 : vector<2xf32> to vector<2x1xf32>
    %143 = arith.cmpf oge, %142, %90 : vector<2x1xf32>
    %144 = arith.select %143, %135, %131 : vector<2x1xi1>, vector<2x1xf32>
    %145 = arith.select %143, %132, %135 : vector<2x1xi1>, vector<2x1xf32>
    %c4_i32 = arith.constant 4 : i32
    %146 = arith.addf %144, %145 : vector<2x1xf32>
    %cst_63 = arith.constant 5.000000e-01 : f32
    %147 = vector.broadcast %cst_63 : f32 to vector<2x1xf32>
    %148 = arith.mulf %147, %146 : vector<2x1xf32>
    %149 = vector.broadcast %148 : vector<2x1xf32> to vector<2x128xf32>
    %150 = arith.cmpf ogt, %84, %149 : vector<2x128xf32>
    %cst_64 = arith.constant 1.000000e+00 : f32
    %cst_65 = arith.constant 0.000000e+00 : f32
    %151 = vector.broadcast %cst_64 : f32 to vector<2x128xf32>
    %152 = vector.broadcast %cst_65 : f32 to vector<2x128xf32>
    %153 = arith.select %150, %151, %152 : vector<2x128xi1>, vector<2x128xf32>
    %cst_66 = arith.constant dense<0.000000e+00> : vector<2xf32>
    %154 = vector.multi_reduction <add>, %153, %cst_66 [1] : vector<2x128xf32> to vector<2xf32>
    %155 = vector.shape_cast %154 : vector<2xf32> to vector<2x1xf32>
    %156 = arith.cmpf oge, %155, %90 : vector<2x1xf32>
    %157 = arith.select %156, %148, %144 : vector<2x1xi1>, vector<2x1xf32>
    %158 = arith.select %156, %145, %148 : vector<2x1xi1>, vector<2x1xf32>
    %c5_i32 = arith.constant 5 : i32
    %159 = arith.addf %157, %158 : vector<2x1xf32>
    %cst_67 = arith.constant 5.000000e-01 : f32
    %160 = vector.broadcast %cst_67 : f32 to vector<2x1xf32>
    %161 = arith.mulf %160, %159 : vector<2x1xf32>
    %162 = vector.broadcast %161 : vector<2x1xf32> to vector<2x128xf32>
    %163 = arith.cmpf ogt, %84, %162 : vector<2x128xf32>
    %cst_68 = arith.constant 1.000000e+00 : f32
    %cst_69 = arith.constant 0.000000e+00 : f32
    %164 = vector.broadcast %cst_68 : f32 to vector<2x128xf32>
    %165 = vector.broadcast %cst_69 : f32 to vector<2x128xf32>
    %166 = arith.select %163, %164, %165 : vector<2x128xi1>, vector<2x128xf32>
    %cst_70 = arith.constant dense<0.000000e+00> : vector<2xf32>
    %167 = vector.multi_reduction <add>, %166, %cst_70 [1] : vector<2x128xf32> to vector<2xf32>
    %168 = vector.shape_cast %167 : vector<2xf32> to vector<2x1xf32>
    %169 = arith.cmpf oge, %168, %90 : vector<2x1xf32>
    %170 = arith.select %169, %161, %157 : vector<2x1xi1>, vector<2x1xf32>
    %171 = arith.select %169, %158, %161 : vector<2x1xi1>, vector<2x1xf32>
    %c6_i32 = arith.constant 6 : i32
    %172 = arith.addf %170, %171 : vector<2x1xf32>
    %cst_71 = arith.constant 5.000000e-01 : f32
    %173 = vector.broadcast %cst_71 : f32 to vector<2x1xf32>
    %174 = arith.mulf %173, %172 : vector<2x1xf32>
    %175 = vector.broadcast %174 : vector<2x1xf32> to vector<2x128xf32>
    %176 = arith.cmpf ogt, %84, %175 : vector<2x128xf32>
    %cst_72 = arith.constant 1.000000e+00 : f32
    %cst_73 = arith.constant 0.000000e+00 : f32
    %177 = vector.broadcast %cst_72 : f32 to vector<2x128xf32>
    %178 = vector.broadcast %cst_73 : f32 to vector<2x128xf32>
    %179 = arith.select %176, %177, %178 : vector<2x128xi1>, vector<2x128xf32>
    %cst_74 = arith.constant dense<0.000000e+00> : vector<2xf32>
    %180 = vector.multi_reduction <add>, %179, %cst_74 [1] : vector<2x128xf32> to vector<2xf32>
    %181 = vector.shape_cast %180 : vector<2xf32> to vector<2x1xf32>
    %182 = arith.cmpf oge, %181, %90 : vector<2x1xf32>
    %183 = arith.select %182, %174, %170 : vector<2x1xi1>, vector<2x1xf32>
    %184 = arith.select %182, %171, %174 : vector<2x1xi1>, vector<2x1xf32>
    %c7_i32 = arith.constant 7 : i32
    %185 = arith.addf %183, %184 : vector<2x1xf32>
    %cst_75 = arith.constant 5.000000e-01 : f32
    %186 = vector.broadcast %cst_75 : f32 to vector<2x1xf32>
    %187 = arith.mulf %186, %185 : vector<2x1xf32>
    %188 = vector.broadcast %187 : vector<2x1xf32> to vector<2x128xf32>
    %189 = arith.cmpf ogt, %84, %188 : vector<2x128xf32>
    %cst_76 = arith.constant 1.000000e+00 : f32
    %cst_77 = arith.constant 0.000000e+00 : f32
    %190 = vector.broadcast %cst_76 : f32 to vector<2x128xf32>
    %191 = vector.broadcast %cst_77 : f32 to vector<2x128xf32>
    %192 = arith.select %189, %190, %191 : vector<2x128xi1>, vector<2x128xf32>
    %cst_78 = arith.constant dense<0.000000e+00> : vector<2xf32>
    %193 = vector.multi_reduction <add>, %192, %cst_78 [1] : vector<2x128xf32> to vector<2xf32>
    %194 = vector.shape_cast %193 : vector<2xf32> to vector<2x1xf32>
    %195 = arith.cmpf oge, %194, %90 : vector<2x1xf32>
    %196 = arith.select %195, %187, %183 : vector<2x1xi1>, vector<2x1xf32>
    %197 = arith.select %195, %184, %187 : vector<2x1xi1>, vector<2x1xf32>
    %c8_i32 = arith.constant 8 : i32
    %198 = arith.addf %196, %197 : vector<2x1xf32>
    %cst_79 = arith.constant 5.000000e-01 : f32
    %199 = vector.broadcast %cst_79 : f32 to vector<2x1xf32>
    %200 = arith.mulf %199, %198 : vector<2x1xf32>
    %201 = vector.broadcast %200 : vector<2x1xf32> to vector<2x128xf32>
    %202 = arith.cmpf ogt, %84, %201 : vector<2x128xf32>
    %cst_80 = arith.constant 1.000000e+00 : f32
    %cst_81 = arith.constant 0.000000e+00 : f32
    %203 = vector.broadcast %cst_80 : f32 to vector<2x128xf32>
    %204 = vector.broadcast %cst_81 : f32 to vector<2x128xf32>
    %205 = arith.select %202, %203, %204 : vector<2x128xi1>, vector<2x128xf32>
    %cst_82 = arith.constant dense<0.000000e+00> : vector<2xf32>
    %206 = vector.multi_reduction <add>, %205, %cst_82 [1] : vector<2x128xf32> to vector<2xf32>
    %207 = vector.shape_cast %206 : vector<2xf32> to vector<2x1xf32>
    %208 = arith.cmpf oge, %207, %90 : vector<2x1xf32>
    %209 = arith.select %208, %200, %196 : vector<2x1xi1>, vector<2x1xf32>
    %210 = arith.select %208, %197, %200 : vector<2x1xi1>, vector<2x1xf32>
    %c9_i32 = arith.constant 9 : i32
    %211 = arith.addf %209, %210 : vector<2x1xf32>
    %cst_83 = arith.constant 5.000000e-01 : f32
    %212 = vector.broadcast %cst_83 : f32 to vector<2x1xf32>
    %213 = arith.mulf %212, %211 : vector<2x1xf32>
    %214 = vector.broadcast %213 : vector<2x1xf32> to vector<2x128xf32>
    %215 = arith.cmpf ogt, %84, %214 : vector<2x128xf32>
    %cst_84 = arith.constant 1.000000e+00 : f32
    %cst_85 = arith.constant 0.000000e+00 : f32
    %216 = vector.broadcast %cst_84 : f32 to vector<2x128xf32>
    %217 = vector.broadcast %cst_85 : f32 to vector<2x128xf32>
    %218 = arith.select %215, %216, %217 : vector<2x128xi1>, vector<2x128xf32>
    %cst_86 = arith.constant dense<0.000000e+00> : vector<2xf32>
    %219 = vector.multi_reduction <add>, %218, %cst_86 [1] : vector<2x128xf32> to vector<2xf32>
    %220 = vector.shape_cast %219 : vector<2xf32> to vector<2x1xf32>
    %221 = arith.cmpf oge, %220, %90 : vector<2x1xf32>
    %222 = arith.select %221, %213, %209 : vector<2x1xi1>, vector<2x1xf32>
    %223 = arith.select %221, %210, %213 : vector<2x1xi1>, vector<2x1xf32>
    %c10_i32 = arith.constant 10 : i32
    %224 = arith.addf %222, %223 : vector<2x1xf32>
    %cst_87 = arith.constant 5.000000e-01 : f32
    %225 = vector.broadcast %cst_87 : f32 to vector<2x1xf32>
    %226 = arith.mulf %225, %224 : vector<2x1xf32>
    %227 = vector.broadcast %226 : vector<2x1xf32> to vector<2x128xf32>
    %228 = arith.cmpf ogt, %84, %227 : vector<2x128xf32>
    %cst_88 = arith.constant 1.000000e+00 : f32
    %cst_89 = arith.constant 0.000000e+00 : f32
    %229 = vector.broadcast %cst_88 : f32 to vector<2x128xf32>
    %230 = vector.broadcast %cst_89 : f32 to vector<2x128xf32>
    %231 = arith.select %228, %229, %230 : vector<2x128xi1>, vector<2x128xf32>
    %cst_90 = arith.constant dense<0.000000e+00> : vector<2xf32>
    %232 = vector.multi_reduction <add>, %231, %cst_90 [1] : vector<2x128xf32> to vector<2xf32>
    %233 = vector.shape_cast %232 : vector<2xf32> to vector<2x1xf32>
    %234 = arith.cmpf oge, %233, %90 : vector<2x1xf32>
    %235 = arith.select %234, %226, %222 : vector<2x1xi1>, vector<2x1xf32>
    %236 = arith.select %234, %223, %226 : vector<2x1xi1>, vector<2x1xf32>
    %c11_i32 = arith.constant 11 : i32
    %237 = arith.addf %235, %236 : vector<2x1xf32>
    %cst_91 = arith.constant 5.000000e-01 : f32
    %238 = vector.broadcast %cst_91 : f32 to vector<2x1xf32>
    %239 = arith.mulf %238, %237 : vector<2x1xf32>
    %240 = vector.broadcast %239 : vector<2x1xf32> to vector<2x128xf32>
    %241 = arith.cmpf ogt, %84, %240 : vector<2x128xf32>
    %cst_92 = arith.constant 1.000000e+00 : f32
    %cst_93 = arith.constant 0.000000e+00 : f32
    %242 = vector.broadcast %cst_92 : f32 to vector<2x128xf32>
    %243 = vector.broadcast %cst_93 : f32 to vector<2x128xf32>
    %244 = arith.select %241, %242, %243 : vector<2x128xi1>, vector<2x128xf32>
    %cst_94 = arith.constant dense<0.000000e+00> : vector<2xf32>
    %245 = vector.multi_reduction <add>, %244, %cst_94 [1] : vector<2x128xf32> to vector<2xf32>
    %246 = vector.shape_cast %245 : vector<2xf32> to vector<2x1xf32>
    %247 = arith.cmpf oge, %246, %90 : vector<2x1xf32>
    %248 = arith.select %247, %239, %235 : vector<2x1xi1>, vector<2x1xf32>
    %249 = arith.select %247, %236, %239 : vector<2x1xi1>, vector<2x1xf32>
    %c12_i32 = arith.constant 12 : i32
    %250 = arith.addf %248, %249 : vector<2x1xf32>
    %cst_95 = arith.constant 5.000000e-01 : f32
    %251 = vector.broadcast %cst_95 : f32 to vector<2x1xf32>
    %252 = arith.mulf %251, %250 : vector<2x1xf32>
    %253 = vector.broadcast %252 : vector<2x1xf32> to vector<2x128xf32>
    %254 = arith.cmpf ogt, %84, %253 : vector<2x128xf32>
    %cst_96 = arith.constant 1.000000e+00 : f32
    %cst_97 = arith.constant 0.000000e+00 : f32
    %255 = vector.broadcast %cst_96 : f32 to vector<2x128xf32>
    %256 = vector.broadcast %cst_97 : f32 to vector<2x128xf32>
    %257 = arith.select %254, %255, %256 : vector<2x128xi1>, vector<2x128xf32>
    %cst_98 = arith.constant dense<0.000000e+00> : vector<2xf32>
    %258 = vector.multi_reduction <add>, %257, %cst_98 [1] : vector<2x128xf32> to vector<2xf32>
    %259 = vector.shape_cast %258 : vector<2xf32> to vector<2x1xf32>
    %260 = arith.cmpf oge, %259, %90 : vector<2x1xf32>
    %261 = arith.select %260, %252, %248 : vector<2x1xi1>, vector<2x1xf32>
    %262 = arith.select %260, %249, %252 : vector<2x1xi1>, vector<2x1xf32>
    %c13_i32 = arith.constant 13 : i32
    %263 = arith.addf %261, %262 : vector<2x1xf32>
    %cst_99 = arith.constant 5.000000e-01 : f32
    %264 = vector.broadcast %cst_99 : f32 to vector<2x1xf32>
    %265 = arith.mulf %264, %263 : vector<2x1xf32>
    %266 = vector.broadcast %265 : vector<2x1xf32> to vector<2x128xf32>
    %267 = arith.cmpf ogt, %84, %266 : vector<2x128xf32>
    %cst_100 = arith.constant 1.000000e+00 : f32
    %cst_101 = arith.constant 0.000000e+00 : f32
    %268 = vector.broadcast %cst_100 : f32 to vector<2x128xf32>
    %269 = vector.broadcast %cst_101 : f32 to vector<2x128xf32>
    %270 = arith.select %267, %268, %269 : vector<2x128xi1>, vector<2x128xf32>
    %cst_102 = arith.constant dense<0.000000e+00> : vector<2xf32>
    %271 = vector.multi_reduction <add>, %270, %cst_102 [1] : vector<2x128xf32> to vector<2xf32>
    %272 = vector.shape_cast %271 : vector<2xf32> to vector<2x1xf32>
    %273 = arith.cmpf oge, %272, %90 : vector<2x1xf32>
    %274 = arith.select %273, %265, %261 : vector<2x1xi1>, vector<2x1xf32>
    %275 = arith.select %273, %262, %265 : vector<2x1xi1>, vector<2x1xf32>
    %c14_i32 = arith.constant 14 : i32
    %276 = arith.addf %274, %275 : vector<2x1xf32>
    %cst_103 = arith.constant 5.000000e-01 : f32
    %277 = vector.broadcast %cst_103 : f32 to vector<2x1xf32>
    %278 = arith.mulf %277, %276 : vector<2x1xf32>
    %279 = vector.broadcast %278 : vector<2x1xf32> to vector<2x128xf32>
    %280 = arith.cmpf ogt, %84, %279 : vector<2x128xf32>
    %cst_104 = arith.constant 1.000000e+00 : f32
    %cst_105 = arith.constant 0.000000e+00 : f32
    %281 = vector.broadcast %cst_104 : f32 to vector<2x128xf32>
    %282 = vector.broadcast %cst_105 : f32 to vector<2x128xf32>
    %283 = arith.select %280, %281, %282 : vector<2x128xi1>, vector<2x128xf32>
    %cst_106 = arith.constant dense<0.000000e+00> : vector<2xf32>
    %284 = vector.multi_reduction <add>, %283, %cst_106 [1] : vector<2x128xf32> to vector<2xf32>
    %285 = vector.shape_cast %284 : vector<2xf32> to vector<2x1xf32>
    %286 = arith.cmpf oge, %285, %90 : vector<2x1xf32>
    %287 = arith.select %286, %278, %274 : vector<2x1xi1>, vector<2x1xf32>
    %288 = arith.select %286, %275, %278 : vector<2x1xi1>, vector<2x1xf32>
    %c15_i32 = arith.constant 15 : i32
    %289 = arith.addf %287, %288 : vector<2x1xf32>
    %cst_107 = arith.constant 5.000000e-01 : f32
    %290 = vector.broadcast %cst_107 : f32 to vector<2x1xf32>
    %291 = arith.mulf %290, %289 : vector<2x1xf32>
    %292 = vector.broadcast %291 : vector<2x1xf32> to vector<2x128xf32>
    %293 = arith.cmpf ogt, %84, %292 : vector<2x128xf32>
    %cst_108 = arith.constant 1.000000e+00 : f32
    %cst_109 = arith.constant 0.000000e+00 : f32
    %294 = vector.broadcast %cst_108 : f32 to vector<2x128xf32>
    %295 = vector.broadcast %cst_109 : f32 to vector<2x128xf32>
    %296 = arith.select %293, %294, %295 : vector<2x128xi1>, vector<2x128xf32>
    %cst_110 = arith.constant dense<0.000000e+00> : vector<2xf32>
    %297 = vector.multi_reduction <add>, %296, %cst_110 [1] : vector<2x128xf32> to vector<2xf32>
    %298 = vector.shape_cast %297 : vector<2xf32> to vector<2x1xf32>
    %299 = arith.cmpf oge, %298, %90 : vector<2x1xf32>
    %300 = arith.select %299, %291, %287 : vector<2x1xi1>, vector<2x1xf32>
    %301 = arith.select %299, %288, %291 : vector<2x1xi1>, vector<2x1xf32>
    %c16_i32 = arith.constant 16 : i32
    %302 = arith.addf %300, %301 : vector<2x1xf32>
    %cst_111 = arith.constant 5.000000e-01 : f32
    %303 = vector.broadcast %cst_111 : f32 to vector<2x1xf32>
    %304 = arith.mulf %303, %302 : vector<2x1xf32>
    %305 = vector.broadcast %304 : vector<2x1xf32> to vector<2x128xf32>
    %306 = arith.cmpf ogt, %84, %305 : vector<2x128xf32>
    %cst_112 = arith.constant 1.000000e+00 : f32
    %cst_113 = arith.constant 0.000000e+00 : f32
    %307 = vector.broadcast %cst_112 : f32 to vector<2x128xf32>
    %308 = vector.broadcast %cst_113 : f32 to vector<2x128xf32>
    %309 = arith.select %306, %307, %308 : vector<2x128xi1>, vector<2x128xf32>
    %cst_114 = arith.constant dense<0.000000e+00> : vector<2xf32>
    %310 = vector.multi_reduction <add>, %309, %cst_114 [1] : vector<2x128xf32> to vector<2xf32>
    %311 = vector.shape_cast %310 : vector<2xf32> to vector<2x1xf32>
    %312 = arith.cmpf oge, %311, %90 : vector<2x1xf32>
    %313 = arith.select %312, %304, %300 : vector<2x1xi1>, vector<2x1xf32>
    %314 = arith.select %312, %301, %304 : vector<2x1xi1>, vector<2x1xf32>
    %c17_i32 = arith.constant 17 : i32
    %315 = arith.addf %313, %314 : vector<2x1xf32>
    %cst_115 = arith.constant 5.000000e-01 : f32
    %316 = vector.broadcast %cst_115 : f32 to vector<2x1xf32>
    %317 = arith.mulf %316, %315 : vector<2x1xf32>
    %318 = vector.broadcast %317 : vector<2x1xf32> to vector<2x128xf32>
    %319 = arith.cmpf ogt, %84, %318 : vector<2x128xf32>
    %cst_116 = arith.constant 1.000000e+00 : f32
    %cst_117 = arith.constant 0.000000e+00 : f32
    %320 = vector.broadcast %cst_116 : f32 to vector<2x128xf32>
    %321 = vector.broadcast %cst_117 : f32 to vector<2x128xf32>
    %322 = arith.select %319, %320, %321 : vector<2x128xi1>, vector<2x128xf32>
    %cst_118 = arith.constant dense<0.000000e+00> : vector<2xf32>
    %323 = vector.multi_reduction <add>, %322, %cst_118 [1] : vector<2x128xf32> to vector<2xf32>
    %324 = vector.shape_cast %323 : vector<2xf32> to vector<2x1xf32>
    %325 = arith.cmpf oge, %324, %90 : vector<2x1xf32>
    %326 = arith.select %325, %317, %313 : vector<2x1xi1>, vector<2x1xf32>
    %327 = arith.select %325, %314, %317 : vector<2x1xi1>, vector<2x1xf32>
    %c18_i32 = arith.constant 18 : i32
    %328 = arith.addf %326, %327 : vector<2x1xf32>
    %cst_119 = arith.constant 5.000000e-01 : f32
    %329 = vector.broadcast %cst_119 : f32 to vector<2x1xf32>
    %330 = arith.mulf %329, %328 : vector<2x1xf32>
    %331 = vector.broadcast %330 : vector<2x1xf32> to vector<2x128xf32>
    %332 = arith.cmpf ogt, %84, %331 : vector<2x128xf32>
    %cst_120 = arith.constant 1.000000e+00 : f32
    %cst_121 = arith.constant 0.000000e+00 : f32
    %333 = vector.broadcast %cst_120 : f32 to vector<2x128xf32>
    %334 = vector.broadcast %cst_121 : f32 to vector<2x128xf32>
    %335 = arith.select %332, %333, %334 : vector<2x128xi1>, vector<2x128xf32>
    %cst_122 = arith.constant dense<0.000000e+00> : vector<2xf32>
    %336 = vector.multi_reduction <add>, %335, %cst_122 [1] : vector<2x128xf32> to vector<2xf32>
    %337 = vector.shape_cast %336 : vector<2xf32> to vector<2x1xf32>
    %338 = arith.cmpf oge, %337, %90 : vector<2x1xf32>
    %339 = arith.select %338, %330, %326 : vector<2x1xi1>, vector<2x1xf32>
    %340 = arith.select %338, %327, %330 : vector<2x1xi1>, vector<2x1xf32>
    %c19_i32 = arith.constant 19 : i32
    %341 = arith.addf %339, %340 : vector<2x1xf32>
    %cst_123 = arith.constant 5.000000e-01 : f32
    %342 = vector.broadcast %cst_123 : f32 to vector<2x1xf32>
    %343 = arith.mulf %342, %341 : vector<2x1xf32>
    %344 = vector.broadcast %343 : vector<2x1xf32> to vector<2x128xf32>
    %345 = arith.cmpf ogt, %84, %344 : vector<2x128xf32>
    %cst_124 = arith.constant 1.000000e+00 : f32
    %cst_125 = arith.constant 0.000000e+00 : f32
    %346 = vector.broadcast %cst_124 : f32 to vector<2x128xf32>
    %347 = vector.broadcast %cst_125 : f32 to vector<2x128xf32>
    %348 = arith.select %345, %346, %347 : vector<2x128xi1>, vector<2x128xf32>
    %cst_126 = arith.constant dense<0.000000e+00> : vector<2xf32>
    %349 = vector.multi_reduction <add>, %348, %cst_126 [1] : vector<2x128xf32> to vector<2xf32>
    %350 = vector.shape_cast %349 : vector<2xf32> to vector<2x1xf32>
    %351 = arith.cmpf oge, %350, %90 : vector<2x1xf32>
    %352 = arith.select %351, %343, %339 : vector<2x1xi1>, vector<2x1xf32>
    %353 = arith.select %351, %340, %343 : vector<2x1xi1>, vector<2x1xf32>
    %c20_i32 = arith.constant 20 : i32
    %354 = arith.addf %352, %353 : vector<2x1xf32>
    %cst_127 = arith.constant 5.000000e-01 : f32
    %355 = vector.broadcast %cst_127 : f32 to vector<2x1xf32>
    %356 = arith.mulf %355, %354 : vector<2x1xf32>
    %357 = vector.broadcast %356 : vector<2x1xf32> to vector<2x128xf32>
    %358 = arith.cmpf ogt, %84, %357 : vector<2x128xf32>
    %cst_128 = arith.constant 1.000000e+00 : f32
    %cst_129 = arith.constant 0.000000e+00 : f32
    %359 = vector.broadcast %cst_128 : f32 to vector<2x128xf32>
    %360 = vector.broadcast %cst_129 : f32 to vector<2x128xf32>
    %361 = arith.select %358, %359, %360 : vector<2x128xi1>, vector<2x128xf32>
    %cst_130 = arith.constant dense<0.000000e+00> : vector<2xf32>
    %362 = vector.multi_reduction <add>, %361, %cst_130 [1] : vector<2x128xf32> to vector<2xf32>
    %363 = vector.shape_cast %362 : vector<2xf32> to vector<2x1xf32>
    %364 = arith.cmpf oge, %363, %90 : vector<2x1xf32>
    %365 = arith.select %364, %356, %352 : vector<2x1xi1>, vector<2x1xf32>
    %366 = arith.select %364, %353, %356 : vector<2x1xi1>, vector<2x1xf32>
    %c21_i32 = arith.constant 21 : i32
    %367 = arith.addf %365, %366 : vector<2x1xf32>
    %cst_131 = arith.constant 5.000000e-01 : f32
    %368 = vector.broadcast %cst_131 : f32 to vector<2x1xf32>
    %369 = arith.mulf %368, %367 : vector<2x1xf32>
    %370 = vector.broadcast %369 : vector<2x1xf32> to vector<2x128xf32>
    %371 = arith.cmpf ogt, %84, %370 : vector<2x128xf32>
    %cst_132 = arith.constant 1.000000e+00 : f32
    %cst_133 = arith.constant 0.000000e+00 : f32
    %372 = vector.broadcast %cst_132 : f32 to vector<2x128xf32>
    %373 = vector.broadcast %cst_133 : f32 to vector<2x128xf32>
    %374 = arith.select %371, %372, %373 : vector<2x128xi1>, vector<2x128xf32>
    %cst_134 = arith.constant dense<0.000000e+00> : vector<2xf32>
    %375 = vector.multi_reduction <add>, %374, %cst_134 [1] : vector<2x128xf32> to vector<2xf32>
    %376 = vector.shape_cast %375 : vector<2xf32> to vector<2x1xf32>
    %377 = arith.cmpf oge, %376, %90 : vector<2x1xf32>
    %378 = arith.select %377, %369, %365 : vector<2x1xi1>, vector<2x1xf32>
    %379 = arith.select %377, %366, %369 : vector<2x1xi1>, vector<2x1xf32>
    %c22_i32 = arith.constant 22 : i32
    %380 = arith.addf %378, %379 : vector<2x1xf32>
    %cst_135 = arith.constant 5.000000e-01 : f32
    %381 = vector.broadcast %cst_135 : f32 to vector<2x1xf32>
    %382 = arith.mulf %381, %380 : vector<2x1xf32>
    %383 = vector.broadcast %382 : vector<2x1xf32> to vector<2x128xf32>
    %384 = arith.cmpf ogt, %84, %383 : vector<2x128xf32>
    %cst_136 = arith.constant 1.000000e+00 : f32
    %cst_137 = arith.constant 0.000000e+00 : f32
    %385 = vector.broadcast %cst_136 : f32 to vector<2x128xf32>
    %386 = vector.broadcast %cst_137 : f32 to vector<2x128xf32>
    %387 = arith.select %384, %385, %386 : vector<2x128xi1>, vector<2x128xf32>
    %cst_138 = arith.constant dense<0.000000e+00> : vector<2xf32>
    %388 = vector.multi_reduction <add>, %387, %cst_138 [1] : vector<2x128xf32> to vector<2xf32>
    %389 = vector.shape_cast %388 : vector<2xf32> to vector<2x1xf32>
    %390 = arith.cmpf oge, %389, %90 : vector<2x1xf32>
    %391 = arith.select %390, %382, %378 : vector<2x1xi1>, vector<2x1xf32>
    %392 = arith.select %390, %379, %382 : vector<2x1xi1>, vector<2x1xf32>
    %c23_i32 = arith.constant 23 : i32
    %393 = arith.addf %391, %392 : vector<2x1xf32>
    %cst_139 = arith.constant 5.000000e-01 : f32
    %394 = vector.broadcast %cst_139 : f32 to vector<2x1xf32>
    %395 = arith.mulf %394, %393 : vector<2x1xf32>
    %396 = vector.broadcast %395 : vector<2x1xf32> to vector<2x128xf32>
    %397 = arith.cmpf ogt, %84, %396 : vector<2x128xf32>
    %cst_140 = arith.constant 1.000000e+00 : f32
    %cst_141 = arith.constant 0.000000e+00 : f32
    %398 = vector.broadcast %cst_140 : f32 to vector<2x128xf32>
    %399 = vector.broadcast %cst_141 : f32 to vector<2x128xf32>
    %400 = arith.select %397, %398, %399 : vector<2x128xi1>, vector<2x128xf32>
    %cst_142 = arith.constant dense<0.000000e+00> : vector<2xf32>
    %401 = vector.multi_reduction <add>, %400, %cst_142 [1] : vector<2x128xf32> to vector<2xf32>
    %402 = vector.shape_cast %401 : vector<2xf32> to vector<2x1xf32>
    %403 = arith.cmpf oge, %402, %90 : vector<2x1xf32>
    %404 = arith.select %403, %395, %391 : vector<2x1xi1>, vector<2x1xf32>
    %405 = arith.select %403, %392, %395 : vector<2x1xi1>, vector<2x1xf32>
    %c24_i32 = arith.constant 24 : i32
    %406 = arith.addf %404, %405 : vector<2x1xf32>
    %cst_143 = arith.constant 5.000000e-01 : f32
    %407 = vector.broadcast %cst_143 : f32 to vector<2x1xf32>
    %408 = arith.mulf %407, %406 : vector<2x1xf32>
    %409 = vector.broadcast %408 : vector<2x1xf32> to vector<2x128xf32>
    %410 = arith.cmpf ogt, %84, %409 : vector<2x128xf32>
    %cst_144 = arith.constant 1.000000e+00 : f32
    %cst_145 = arith.constant 0.000000e+00 : f32
    %411 = vector.broadcast %cst_144 : f32 to vector<2x128xf32>
    %412 = vector.broadcast %cst_145 : f32 to vector<2x128xf32>
    %413 = arith.select %410, %411, %412 : vector<2x128xi1>, vector<2x128xf32>
    %cst_146 = arith.constant dense<0.000000e+00> : vector<2xf32>
    %414 = vector.multi_reduction <add>, %413, %cst_146 [1] : vector<2x128xf32> to vector<2xf32>
    %415 = vector.shape_cast %414 : vector<2xf32> to vector<2x1xf32>
    %416 = arith.cmpf oge, %415, %90 : vector<2x1xf32>
    %417 = arith.select %416, %408, %404 : vector<2x1xi1>, vector<2x1xf32>
    %418 = arith.select %416, %405, %408 : vector<2x1xi1>, vector<2x1xf32>
    %c25_i32 = arith.constant 25 : i32
    %419 = arith.addf %417, %418 : vector<2x1xf32>
    %cst_147 = arith.constant 5.000000e-01 : f32
    %420 = vector.broadcast %cst_147 : f32 to vector<2x1xf32>
    %421 = arith.mulf %420, %419 : vector<2x1xf32>
    %422 = vector.broadcast %421 : vector<2x1xf32> to vector<2x128xf32>
    %423 = arith.cmpf ogt, %84, %422 : vector<2x128xf32>
    %cst_148 = arith.constant 1.000000e+00 : f32
    %cst_149 = arith.constant 0.000000e+00 : f32
    %424 = vector.broadcast %cst_148 : f32 to vector<2x128xf32>
    %425 = vector.broadcast %cst_149 : f32 to vector<2x128xf32>
    %426 = arith.select %423, %424, %425 : vector<2x128xi1>, vector<2x128xf32>
    %cst_150 = arith.constant dense<0.000000e+00> : vector<2xf32>
    %427 = vector.multi_reduction <add>, %426, %cst_150 [1] : vector<2x128xf32> to vector<2xf32>
    %428 = vector.shape_cast %427 : vector<2xf32> to vector<2x1xf32>
    %429 = arith.cmpf oge, %428, %90 : vector<2x1xf32>
    %430 = arith.select %429, %421, %417 : vector<2x1xi1>, vector<2x1xf32>
    %431 = arith.select %429, %418, %421 : vector<2x1xi1>, vector<2x1xf32>
    %c26_i32 = arith.constant 26 : i32
    %432 = arith.addf %430, %431 : vector<2x1xf32>
    %cst_151 = arith.constant 5.000000e-01 : f32
    %433 = vector.broadcast %cst_151 : f32 to vector<2x1xf32>
    %434 = arith.mulf %433, %432 : vector<2x1xf32>
    %435 = vector.broadcast %434 : vector<2x1xf32> to vector<2x128xf32>
    %436 = arith.cmpf ogt, %84, %435 : vector<2x128xf32>
    %cst_152 = arith.constant 1.000000e+00 : f32
    %cst_153 = arith.constant 0.000000e+00 : f32
    %437 = vector.broadcast %cst_152 : f32 to vector<2x128xf32>
    %438 = vector.broadcast %cst_153 : f32 to vector<2x128xf32>
    %439 = arith.select %436, %437, %438 : vector<2x128xi1>, vector<2x128xf32>
    %cst_154 = arith.constant dense<0.000000e+00> : vector<2xf32>
    %440 = vector.multi_reduction <add>, %439, %cst_154 [1] : vector<2x128xf32> to vector<2xf32>
    %441 = vector.shape_cast %440 : vector<2xf32> to vector<2x1xf32>
    %442 = arith.cmpf oge, %441, %90 : vector<2x1xf32>
    %443 = arith.select %442, %434, %430 : vector<2x1xi1>, vector<2x1xf32>
    %444 = arith.select %442, %431, %434 : vector<2x1xi1>, vector<2x1xf32>
    %c27_i32 = arith.constant 27 : i32
    %445 = arith.addf %443, %444 : vector<2x1xf32>
    %cst_155 = arith.constant 5.000000e-01 : f32
    %446 = vector.broadcast %cst_155 : f32 to vector<2x1xf32>
    %447 = arith.mulf %446, %445 : vector<2x1xf32>
    %448 = vector.broadcast %447 : vector<2x1xf32> to vector<2x128xf32>
    %449 = arith.cmpf ogt, %84, %448 : vector<2x128xf32>
    %cst_156 = arith.constant 1.000000e+00 : f32
    %cst_157 = arith.constant 0.000000e+00 : f32
    %450 = vector.broadcast %cst_156 : f32 to vector<2x128xf32>
    %451 = vector.broadcast %cst_157 : f32 to vector<2x128xf32>
    %452 = arith.select %449, %450, %451 : vector<2x128xi1>, vector<2x128xf32>
    %cst_158 = arith.constant dense<0.000000e+00> : vector<2xf32>
    %453 = vector.multi_reduction <add>, %452, %cst_158 [1] : vector<2x128xf32> to vector<2xf32>
    %454 = vector.shape_cast %453 : vector<2xf32> to vector<2x1xf32>
    %455 = arith.cmpf oge, %454, %90 : vector<2x1xf32>
    %456 = arith.select %455, %447, %443 : vector<2x1xi1>, vector<2x1xf32>
    %457 = arith.select %455, %444, %447 : vector<2x1xi1>, vector<2x1xf32>
    %c28_i32 = arith.constant 28 : i32
    %458 = arith.addf %456, %457 : vector<2x1xf32>
    %cst_159 = arith.constant 5.000000e-01 : f32
    %459 = vector.broadcast %cst_159 : f32 to vector<2x1xf32>
    %460 = arith.mulf %459, %458 : vector<2x1xf32>
    %461 = vector.broadcast %460 : vector<2x1xf32> to vector<2x128xf32>
    %462 = arith.cmpf ogt, %84, %461 : vector<2x128xf32>
    %cst_160 = arith.constant 1.000000e+00 : f32
    %cst_161 = arith.constant 0.000000e+00 : f32
    %463 = vector.broadcast %cst_160 : f32 to vector<2x128xf32>
    %464 = vector.broadcast %cst_161 : f32 to vector<2x128xf32>
    %465 = arith.select %462, %463, %464 : vector<2x128xi1>, vector<2x128xf32>
    %cst_162 = arith.constant dense<0.000000e+00> : vector<2xf32>
    %466 = vector.multi_reduction <add>, %465, %cst_162 [1] : vector<2x128xf32> to vector<2xf32>
    %467 = vector.shape_cast %466 : vector<2xf32> to vector<2x1xf32>
    %468 = arith.cmpf oge, %467, %90 : vector<2x1xf32>
    %469 = arith.select %468, %460, %456 : vector<2x1xi1>, vector<2x1xf32>
    %470 = arith.select %468, %457, %460 : vector<2x1xi1>, vector<2x1xf32>
    %c29_i32 = arith.constant 29 : i32
    %471 = arith.addf %469, %470 : vector<2x1xf32>
    %cst_163 = arith.constant 5.000000e-01 : f32
    %472 = vector.broadcast %cst_163 : f32 to vector<2x1xf32>
    %473 = arith.mulf %472, %471 : vector<2x1xf32>
    %474 = vector.broadcast %473 : vector<2x1xf32> to vector<2x128xf32>
    %475 = arith.cmpf ogt, %84, %474 : vector<2x128xf32>
    %cst_164 = arith.constant 1.000000e+00 : f32
    %cst_165 = arith.constant 0.000000e+00 : f32
    %476 = vector.broadcast %cst_164 : f32 to vector<2x128xf32>
    %477 = vector.broadcast %cst_165 : f32 to vector<2x128xf32>
    %478 = arith.select %475, %476, %477 : vector<2x128xi1>, vector<2x128xf32>
    %cst_166 = arith.constant dense<0.000000e+00> : vector<2xf32>
    %479 = vector.multi_reduction <add>, %478, %cst_166 [1] : vector<2x128xf32> to vector<2xf32>
    %480 = vector.shape_cast %479 : vector<2xf32> to vector<2x1xf32>
    %481 = arith.cmpf oge, %480, %90 : vector<2x1xf32>
    %482 = arith.select %481, %473, %469 : vector<2x1xi1>, vector<2x1xf32>
    %483 = arith.select %481, %470, %473 : vector<2x1xi1>, vector<2x1xf32>
    %c30_i32 = arith.constant 30 : i32
    %484 = arith.addf %482, %483 : vector<2x1xf32>
    %cst_167 = arith.constant 5.000000e-01 : f32
    %485 = vector.broadcast %cst_167 : f32 to vector<2x1xf32>
    %486 = arith.mulf %485, %484 : vector<2x1xf32>
    %487 = vector.broadcast %486 : vector<2x1xf32> to vector<2x128xf32>
    %488 = arith.cmpf ogt, %84, %487 : vector<2x128xf32>
    %cst_168 = arith.constant 1.000000e+00 : f32
    %cst_169 = arith.constant 0.000000e+00 : f32
    %489 = vector.broadcast %cst_168 : f32 to vector<2x128xf32>
    %490 = vector.broadcast %cst_169 : f32 to vector<2x128xf32>
    %491 = arith.select %488, %489, %490 : vector<2x128xi1>, vector<2x128xf32>
    %cst_170 = arith.constant dense<0.000000e+00> : vector<2xf32>
    %492 = vector.multi_reduction <add>, %491, %cst_170 [1] : vector<2x128xf32> to vector<2xf32>
    %493 = vector.shape_cast %492 : vector<2xf32> to vector<2x1xf32>
    %494 = arith.cmpf oge, %493, %90 : vector<2x1xf32>
    %495 = arith.select %494, %486, %482 : vector<2x1xi1>, vector<2x1xf32>
    %496 = arith.select %494, %483, %486 : vector<2x1xi1>, vector<2x1xf32>
    %c31_i32 = arith.constant 31 : i32
    %497 = arith.addf %495, %496 : vector<2x1xf32>
    %cst_171 = arith.constant 5.000000e-01 : f32
    %498 = vector.broadcast %cst_171 : f32 to vector<2x1xf32>
    %499 = arith.mulf %498, %497 : vector<2x1xf32>
    %500 = vector.broadcast %499 : vector<2x1xf32> to vector<2x128xf32>
    %501 = arith.cmpf ogt, %84, %500 : vector<2x128xf32>
    %cst_172 = arith.constant 1.000000e+00 : f32
    %cst_173 = arith.constant 0.000000e+00 : f32
    %502 = vector.broadcast %cst_172 : f32 to vector<2x128xf32>
    %503 = vector.broadcast %cst_173 : f32 to vector<2x128xf32>
    %504 = arith.select %501, %502, %503 : vector<2x128xi1>, vector<2x128xf32>
    %cst_174 = arith.constant dense<0.000000e+00> : vector<2xf32>
    %505 = vector.multi_reduction <add>, %504, %cst_174 [1] : vector<2x128xf32> to vector<2xf32>
    %506 = vector.shape_cast %505 : vector<2xf32> to vector<2x1xf32>
    %507 = arith.cmpf oge, %506, %90 : vector<2x1xf32>
    %508 = arith.select %507, %499, %495 : vector<2x1xi1>, vector<2x1xf32>
    %509 = arith.select %507, %496, %499 : vector<2x1xi1>, vector<2x1xf32>
    %510 = vector.broadcast %508 : vector<2x1xf32> to vector<2x128xf32>
    %511 = arith.cmpf ogt, %84, %510 : vector<2x128xf32>
    %cst_175 = arith.constant 1.000000e+00 : f32
    %cst_176 = arith.constant 0.000000e+00 : f32
    %512 = vector.broadcast %cst_175 : f32 to vector<2x128xf32>
    %513 = vector.broadcast %cst_176 : f32 to vector<2x128xf32>
    %514 = arith.select %511, %512, %513 : vector<2x128xi1>, vector<2x128xf32>
    %cst_177 = arith.constant dense<0.000000e+00> : vector<2xf32>
    %515 = vector.multi_reduction <add>, %514, %cst_177 [1] : vector<2x128xf32> to vector<2xf32>
    %516 = vector.shape_cast %515 : vector<2xf32> to vector<2x1xf32>
    %517 = arith.mulf %84, %514 : vector<2x128xf32>
    %cst_178 = arith.constant dense<0.000000e+00> : vector<2xf32>
    %518 = vector.multi_reduction <add>, %517, %cst_178 [1] : vector<2x128xf32> to vector<2xf32>
    %519 = vector.shape_cast %518 : vector<2xf32> to vector<2x1xf32>
    %520 = arith.subf %90, %516 : vector<2x1xf32>
    %521 = arith.mulf %520, %508 : vector<2x1xf32>
    %522 = arith.addf %519, %521 : vector<2x1xf32>
    %523 = arith.mulf %82, %34 : vector<2x128xf32>
    %524 = vector.shape_cast %523 : vector<2x128xf32> to vector<1x2x128xf32>
    %cst_179 = arith.constant dense<0.000000e+00> : vector<1xf32>
    %525 = vector.multi_reduction <add>, %524, %cst_179 [1, 2] : vector<1x2x128xf32> to vector<1xf32>
    %526 = vector.shape_cast %525 : vector<1xf32> to vector<1x1x1xf32>
    %527 = vector.extract %526[0, 0, 0] : f32 from vector<1x1x1xf32>
    %528 = vector.shape_cast %522 : vector<2x1xf32> to vector<1x2x1xf32>
    %cst_180 = arith.constant dense<0.000000e+00> : vector<1xf32>
    %529 = vector.multi_reduction <add>, %528, %cst_180 [1, 2] : vector<1x2x1xf32> to vector<1xf32>
    %530 = vector.shape_cast %529 : vector<1xf32> to vector<1x1x1xf32>
    %531 = vector.extract %530[0, 0, 0] : f32 from vector<1x1x1xf32>
    %532 = arith.addf %527, %531 : f32
    %533 = vector.shape_cast %34 : vector<2x128xf32> to vector<1x2x128xf32>
    %cst_181 = arith.constant dense<0.000000e+00> : vector<1xf32>
    %534 = vector.multi_reduction <add>, %533, %cst_181 [1, 2] : vector<1x2x128xf32> to vector<1xf32>
    %535 = vector.shape_cast %534 : vector<1xf32> to vector<1x1x1xf32>
    %536 = vector.extract %535[0, 0, 0] : f32 from vector<1x1x1xf32>
    %537 = tpu.iota {dimensions = array<i32: 1>} : vector<1x128xi32>
    %c0_i32_182 = arith.constant 0 : i32
    %538 = vector.broadcast %c0_i32_182 : i32 to vector<1x128xi32>
    %539 = arith.cmpi eq, %537, %538 : vector<1x128xi32>
    %cst_183 = arith.constant 0.000000e+00 : f32
    %540 = vector.broadcast %18 : f32 to vector<1x128xf32>
    %541 = vector.broadcast %cst_183 : f32 to vector<1x128xf32>
    %542 = arith.select %539, %540, %541 : vector<1x128xi1>, vector<1x128xf32>
    %c1_i32_184 = arith.constant 1 : i32
    %543 = vector.broadcast %c1_i32_184 : i32 to vector<1x128xi32>
    %544 = arith.cmpi eq, %537, %543 : vector<1x128xi32>
    %cst_185 = arith.constant 0.000000e+00 : f32
    %545 = vector.broadcast %532 : f32 to vector<1x128xf32>
    %546 = vector.broadcast %cst_185 : f32 to vector<1x128xf32>
    %547 = arith.select %544, %545, %546 : vector<1x128xi1>, vector<1x128xf32>
    %548 = arith.addf %542, %547 : vector<1x128xf32>
    %c2_i32_186 = arith.constant 2 : i32
    %549 = vector.broadcast %c2_i32_186 : i32 to vector<1x128xi32>
    %550 = arith.cmpi eq, %537, %549 : vector<1x128xi32>
    %cst_187 = arith.constant 0.000000e+00 : f32
    %551 = vector.broadcast %28 : f32 to vector<1x128xf32>
    %552 = vector.broadcast %cst_187 : f32 to vector<1x128xf32>
    %553 = arith.select %550, %551, %552 : vector<1x128xi1>, vector<1x128xf32>
    %554 = arith.addf %548, %553 : vector<1x128xf32>
    %c3_i32_188 = arith.constant 3 : i32
    %555 = vector.broadcast %c3_i32_188 : i32 to vector<1x128xi32>
    %556 = arith.cmpi eq, %537, %555 : vector<1x128xi32>
    %cst_189 = arith.constant 0.000000e+00 : f32
    %557 = vector.broadcast %536 : f32 to vector<1x128xf32>
    %558 = vector.broadcast %cst_189 : f32 to vector<1x128xf32>
    %559 = arith.select %556, %557, %558 : vector<1x128xi1>, vector<1x128xf32>
    %560 = arith.addf %554, %559 : vector<1x128xf32>
    %c0_190 = arith.constant 0 : index
    %c0_191 = arith.constant 0 : index
    %c0_192 = arith.constant 0 : index
    %561 = vector.load %arg8[%c0_190, %c0_191, %c0_192] : memref<1x1x128xf32, #tpu.memory_space<vmem>>, vector<1x1x128xf32>
    %562 = vector.shape_cast %561 : vector<1x1x128xf32> to vector<1x128xf32>
    %563 = vector.shape_cast %560 : vector<1x128xf32> to vector<1x1x128xf32>
    tpu.vector_store %arg8[%c0_190, %c0_191, %c0_192], %563 {strides = array<i32>} : memref<1x1x128xf32, #tpu.memory_space<vmem>>, vector<1x1x128xf32>,
    return
  }
  func.func @transform_0(%arg0: i32) -> (i32, i32, i32) {
    %c0_i32 = arith.constant 0 : i32
    %c0_i32_0 = arith.constant 0 : i32
    %c0_i32_1 = arith.constant 0 : i32
    return %arg0, %c0_i32, %c0_i32_0 : i32, i32, i32
  }
  func.func @transform_1(%arg0: i32) -> (i32, i32, i32) {
    %c0_i32 = arith.constant 0 : i32
    %c0_i32_0 = arith.constant 0 : i32
    %c0_i32_1 = arith.constant 0 : i32
    return %arg0, %c0_i32, %c0_i32_0 : i32, i32, i32
  }
  func.func @transform_2(%arg0: i32) -> (i32, i32, i32) {
    %c0_i32 = arith.constant 0 : i32
    %c0_i32_0 = arith.constant 0 : i32
    %c0_i32_1 = arith.constant 0 : i32
    return %arg0, %c0_i32, %c0_i32_0 : i32, i32, i32
  }
  func.func @transform_3(%arg0: i32) -> (i32, i32, i32) {
    %c0_i32 = arith.constant 0 : i32
    %c0_i32_0 = arith.constant 0 : i32
    %c0_i32_1 = arith.constant 0 : i32
    return %arg0, %c0_i32, %c0_i32_0 : i32, i32, i32
  }
  func.func @transform_4(%arg0: i32) -> (i32, i32, i32) {
    %c0_i32 = arith.constant 0 : i32
    %c0_i32_0 = arith.constant 0 : i32
    %c0_i32_1 = arith.constant 0 : i32
    return %c0_i32, %arg0, %c0_i32_0 : i32, i32, i32
  }
  func.func @transform_5(%arg0: i32) -> (i32, i32, i32) {
    %c0_i32 = arith.constant 0 : i32
    %c0_i32_0 = arith.constant 0 : i32
    %c0_i32_1 = arith.constant 0 : i32
    return %c0_i32, %arg0, %c0_i32_0 : i32, i32, i32
  }
  func.func @transform_6(%arg0: i32) -> (i32, i32, i32) {
    %c0_i32 = arith.constant 0 : i32
    %c0_i32_0 = arith.constant 0 : i32
    %c0_i32_1 = arith.constant 0 : i32
    return %arg0, %c0_i32, %c0_i32_0 : i32, i32, i32
  }
  func.func @transform_7(%arg0: i32) -> (i32, i32, i32) {
    %c0_i32 = arith.constant 0 : i32
    %c0_i32_0 = arith.constant 0 : i32
    %c0_i32_1 = arith.constant 0 : i32
    return %arg0, %c0_i32, %c0_i32_0 : i32, i32, i32
  }
}

</mosaic_0001>

<llo_original>
// kernel: tpu_custom_call.1
$region0: #{tpu_custom_call.1}
  #allocation0 [shape = 'u32[]', space=smem, size = 0x4, offset = 0x4, fixed_abs, tag = 'smem constant byte address 0x4 - core index']
  #allocation1 [shape = 'u32[144,128]{1,0:T(1,128)}', space=vmem, size = 0x12000, scoped, tag = 'internal scratch']
  %s0 = inlined_call_operand.vmem [shape: f32[2,128,4], index: 0, kind: input, shape index: {}]
  %s1 = inlined_call_operand.vmem [shape: f32[2,128,4], index: 1, kind: input, shape index: {}]
  %s2 = inlined_call_operand.vmem [shape: f32[2,128,10], index: 2, kind: input, shape index: {}]
  %s3 = inlined_call_operand.vmem [shape: f32[2,128,10], index: 3, kind: input, shape index: {}]
  %s4 = inlined_call_operand.vmem [shape: f32[4,2,128], index: 4, kind: input, shape index: {}]
  %s5 = inlined_call_operand.vmem [shape: s32[1,2,128], index: 5, kind: input, shape index: {}]
  %s6 = inlined_call_operand.vmem [shape: f32[2,128,1], index: 6, kind: input, shape index: {}]
  %s7 = inlined_call_operand.hbm [shape: f32[1,1,128], index: 7, kind: output, shape index: {}]
  %s8 = sld [smem:[#allocation0]]
  $region38: #{tpu_custom_call.1} parent=0
    _
  %s10 = ssub.s32 1, %s8
  %s11 = scalar_select 0, %s10, %s8
  $region1: #{tpu_custom_call.1} parent=0
    #allocation2 [shape = 'u8[512]{0}', space=vmem, size = 0x400, scoped, tag = 'output window, operand 0, single buffered']
    #allocation3 [shape = 's32[1]{0}', space=sflag, size = 0x4, scoped, tag = 'scoped memory for tpu_custom_call.1']
    %12 = vsyncpa [#allocation3], 0
    // Predicated region
    $region2: #{tpu_custom_call.1} parent=1 // pred_check
      _
    $region3: #{tpu_custom_call.1} parent=1 // pred_check_branch
      %14 = sbr.rel (0) target = $region5
    $region4: #{tpu_custom_call.1} parent=1 // pred_region
      _
    $region5: #{tpu_custom_call.1} parent=1 // pred_fallthru
      _
    // Predicated region
    $region6: #{tpu_custom_call.1} parent=1 // pred_check
      _
    $region7: #{tpu_custom_call.1} parent=1 // pred_check_branch
      %16 = sbr.rel (0) target = $region9
    $region8: #{tpu_custom_call.1} parent=1 // pred_region
      _
    $region9: #{tpu_custom_call.1} parent=1 // pred_fallthru
      _
    // Predicated region
    $region10: #{tpu_custom_call.1} parent=1 // pred_check
      _
    $region11: #{tpu_custom_call.1} parent=1 // pred_check_branch
      %18 = sbr.rel (0) target = $region13
    $region12: #{tpu_custom_call.1} parent=1 // pred_region
      _
    $region13: #{tpu_custom_call.1} parent=1 // pred_fallthru
      _
    // Predicated region
    $region14: #{tpu_custom_call.1} parent=1 // pred_check
      _
    $region15: #{tpu_custom_call.1} parent=1 // pred_check_branch
      %20 = sbr.rel (0) target = $region17
    $region16: #{tpu_custom_call.1} parent=1 // pred_region
      _
    $region17: #{tpu_custom_call.1} parent=1 // pred_fallthru
      _
    // Predicated region
    $region18: #{tpu_custom_call.1} parent=1 // pred_check
      _
    $region19: #{tpu_custom_call.1} parent=1 // pred_check_branch
      %22 = sbr.rel (0) target = $region21
    $region20: #{tpu_custom_call.1} parent=1 // pred_region
      _
    $region21: #{tpu_custom_call.1} parent=1 // pred_fallthru
      _
    // Predicated region
    $region22: #{tpu_custom_call.1} parent=1 // pred_check
      _
    $region23: #{tpu_custom_call.1} parent=1 // pred_check_branch
      %24 = sbr.rel (0) target = $region25
    $region24: #{tpu_custom_call.1} parent=1 // pred_region
      _
    $region25: #{tpu_custom_call.1} parent=1 // pred_fallthru
      _
    // Predicated region
    $region26: #{tpu_custom_call.1} parent=1 // pred_check
      _
    $region27: #{tpu_custom_call.1} parent=1 // pred_check_branch
      %26 = sbr.rel (0) target = $region29
    $region28: #{tpu_custom_call.1} parent=1 // pred_region
      _
    $region29: #{tpu_custom_call.1} parent=1 // pred_fallthru
      _
    %v27 = vld [vmem:[%s6] sm:$0xff]
    %v28 = vld [vmem:[%s6 + $0x8] sm:$0xff]
    %v29 = vld [vmem:[%s6 + $0x10] sm:$0xff]
    %v30 = vld [vmem:[%s6 + $0x18] sm:$0xff]
    %v31 = vld [vmem:[%s6 + $0x20] sm:$0xff]
    %v32 = vld [vmem:[%s6 + $0x28] sm:$0xff]
    %v33 = vld [vmem:[%s6 + $0x30] sm:$0xff]
    %v34 = vld [vmem:[%s6 + $0x38] sm:$0xff]
    %v35 = vld [vmem:[%s6 + $0x40] sm:$0xff]
    %v36 = vld [vmem:[%s6 + $0x48] sm:$0xff]
    %v37 = vld [vmem:[%s6 + $0x50] sm:$0xff]
    %v38 = vld [vmem:[%s6 + $0x58] sm:$0xff]
    %v39 = vld [vmem:[%s6 + $0x60] sm:$0xff]
    %v40 = vld [vmem:[%s6 + $0x68] sm:$0xff]
    %v41 = vld [vmem:[%s6 + $0x70] sm:$0xff]
    %v42 = vld [vmem:[%s6 + $0x78] sm:$0xff]
    %v43 = vld [vmem:[%s6 + $0x80] sm:$0xff]
    %v44 = vld [vmem:[%s6 + $0x88] sm:$0xff]
    %v45 = vld [vmem:[%s6 + $0x90] sm:$0xff]
    %v46 = vld [vmem:[%s6 + $0x98] sm:$0xff]
    %v47 = vld [vmem:[%s6 + $0xa0] sm:$0xff]
    %v48 = vld [vmem:[%s6 + $0xa8] sm:$0xff]
    %v49 = vld [vmem:[%s6 + $0xb0] sm:$0xff]
    %v50 = vld [vmem:[%s6 + $0xb8] sm:$0xff]
    %v51 = vld [vmem:[%s6 + $0xc0] sm:$0xff]
    %v52 = vld [vmem:[%s6 + $0xc8] sm:$0xff]
    %v53 = vld [vmem:[%s6 + $0xd0] sm:$0xff]
    %v54 = vld [vmem:[%s6 + $0xd8] sm:$0xff]
    %v55 = vld [vmem:[%s6 + $0xe0] sm:$0xff]
    %v56 = vld [vmem:[%s6 + $0xe8] sm:$0xff]
    %v57 = vld [vmem:[%s6 + $0xf0] sm:$0xff]
    %v58 = vld [vmem:[%s6 + $0xf8] sm:$0xff]
    %v59 = vld [vmem:[%s0] sm:$0xff]
    %v60 = vld [vmem:[%s0 + $0x8] sm:$0xff]
    %v61 = vld [vmem:[%s0 + $0x10] sm:$0xff]
    %v62 = vld [vmem:[%s0 + $0x18] sm:$0xff]
    %v63 = vld [vmem:[%s0 + $0x20] sm:$0xff]
    %v64 = vld [vmem:[%s0 + $0x28] sm:$0xff]
    %v65 = vld [vmem:[%s0 + $0x30] sm:$0xff]
    %v66 = vld [vmem:[%s0 + $0x38] sm:$0xff]
    %v67 = vld [vmem:[%s0 + $0x40] sm:$0xff]
    %v68 = vld [vmem:[%s0 + $0x48] sm:$0xff]
    %v69 = vld [vmem:[%s0 + $0x50] sm:$0xff]
    %v70 = vld [vmem:[%s0 + $0x58] sm:$0xff]
    %v71 = vld [vmem:[%s0 + $0x60] sm:$0xff]
    %v72 = vld [vmem:[%s0 + $0x68] sm:$0xff]
    %v73 = vld [vmem:[%s0 + $0x70] sm:$0xff]
    %v74 = vld [vmem:[%s0 + $0x78] sm:$0xff]
    %v75 = vld [vmem:[%s0 + $0x80] sm:$0xff]
    %v76 = vld [vmem:[%s0 + $0x88] sm:$0xff]
    %v77 = vld [vmem:[%s0 + $0x90] sm:$0xff]
    %v78 = vld [vmem:[%s0 + $0x98] sm:$0xff]
    %v79 = vld [vmem:[%s0 + $0xa0] sm:$0xff]
    %v80 = vld [vmem:[%s0 + $0xa8] sm:$0xff]
    %v81 = vld [vmem:[%s0 + $0xb0] sm:$0xff]
    %v82 = vld [vmem:[%s0 + $0xb8] sm:$0xff]
    %v83 = vld [vmem:[%s0 + $0xc0] sm:$0xff]
    %v84 = vld [vmem:[%s0 + $0xc8] sm:$0xff]
    %v85 = vld [vmem:[%s0 + $0xd0] sm:$0xff]
    %v86 = vld [vmem:[%s0 + $0xd8] sm:$0xff]
    %v87 = vld [vmem:[%s0 + $0xe0] sm:$0xff]
    %v88 = vld [vmem:[%s0 + $0xe8] sm:$0xff]
    %v89 = vld [vmem:[%s0 + $0xf0] sm:$0xff]
    %v90 = vld [vmem:[%s0 + $0xf8] sm:$0xff]
    %v91 = vld [vmem:[%s1] sm:$0xff]
    %v92 = vld [vmem:[%s1 + $0x8] sm:$0xff]
    %v93 = vld [vmem:[%s1 + $0x10] sm:$0xff]
    %v94 = vld [vmem:[%s1 + $0x18] sm:$0xff]
    %v95 = vld [vmem:[%s1 + $0x20] sm:$0xff]
    %v96 = vld [vmem:[%s1 + $0x28] sm:$0xff]
    %v97 = vld [vmem:[%s1 + $0x30] sm:$0xff]
    %v98 = vld [vmem:[%s1 + $0x38] sm:$0xff]
    %v99 = vld [vmem:[%s1 + $0x40] sm:$0xff]
    %v100 = vld [vmem:[%s1 + $0x48] sm:$0xff]
    %v101 = vld [vmem:[%s1 + $0x50] sm:$0xff]
    %v102 = vld [vmem:[%s1 + $0x58] sm:$0xff]
    %v103 = vld [vmem:[%s1 + $0x60] sm:$0xff]
    %v104 = vld [vmem:[%s1 + $0x68] sm:$0xff]
    %v105 = vld [vmem:[%s1 + $0x70] sm:$0xff]
    %v106 = vld [vmem:[%s1 + $0x78] sm:$0xff]
    %v107 = vld [vmem:[%s1 + $0x80] sm:$0xff]
    %v108 = vld [vmem:[%s1 + $0x88] sm:$0xff]
    %v109 = vld [vmem:[%s1 + $0x90] sm:$0xff]
    %v110 = vld [vmem:[%s1 + $0x98] sm:$0xff]
    %v111 = vld [vmem:[%s1 + $0xa0] sm:$0xff]
    %v112 = vld [vmem:[%s1 + $0xa8] sm:$0xff]
    %v113 = vld [vmem:[%s1 + $0xb0] sm:$0xff]
    %v114 = vld [vmem:[%s1 + $0xb8] sm:$0xff]
    %v115 = vld [vmem:[%s1 + $0xc0] sm:$0xff]
    %v116 = vld [vmem:[%s1 + $0xc8] sm:$0xff]
    %v117 = vld [vmem:[%s1 + $0xd0] sm:$0xff]
    %v118 = vld [vmem:[%s1 + $0xd8] sm:$0xff]
    %v119 = vld [vmem:[%s1 + $0xe0] sm:$0xff]
    %v120 = vld [vmem:[%s1 + $0xe8] sm:$0xff]
    %v121 = vld [vmem:[%s1 + $0xf0] sm:$0xff]
    %v122 = vld [vmem:[%s1 + $0xf8] sm:$0xff]
    %v123 = vsub.f32 %v59, %v91
    %v124 = vsub.f32 %v60, %v92
    %v125 = vsub.f32 %v61, %v93
    %v126 = vsub.f32 %v62, %v94
    %v127 = vsub.f32 %v63, %v95
    %v128 = vsub.f32 %v64, %v96
    %v129 = vsub.f32 %v65, %v97
    %v130 = vsub.f32 %v66, %v98
    %v131 = vsub.f32 %v67, %v99
    %v132 = vsub.f32 %v68, %v100
    %v133 = vsub.f32 %v69, %v101
    %v134 = vsub.f32 %v70, %v102
    %v135 = vsub.f32 %v71, %v103
    %v136 = vsub.f32 %v72, %v104
    %v137 = vsub.f32 %v73, %v105
    %v138 = vsub.f32 %v74, %v106
    %v139 = vsub.f32 %v75, %v107
    %v140 = vsub.f32 %v76, %v108
    %v141 = vsub.f32 %v77, %v109
    %v142 = vsub.f32 %v78, %v110
    %v143 = vsub.f32 %v79, %v111
    %v144 = vsub.f32 %v80, %v112
    %v145 = vsub.f32 %v81, %v113
    %v146 = vsub.f32 %v82, %v114
    %v147 = vsub.f32 %v83, %v115
    %v148 = vsub.f32 %v84, %v116
    %v149 = vsub.f32 %v85, %v117
    %v150 = vsub.f32 %v86, %v118
    %v151 = vsub.f32 %v87, %v119
    %v152 = vsub.f32 %v88, %v120
    %v153 = vsub.f32 %v89, %v121
    %v154 = vsub.f32 %v90, %v122
    %v155 = vand.u32 2147483647, %v123
    %v156 = vand.u32 2147483647, %v124
    %v157 = vand.u32 2147483647, %v125
    %v158 = vand.u32 2147483647, %v126
    %v159 = vand.u32 2147483647, %v127
    %v160 = vand.u32 2147483647, %v128
    %v161 = vand.u32 2147483647, %v129
    %v162 = vand.u32 2147483647, %v130
    %v163 = vand.u32 2147483647, %v131
    %v164 = vand.u32 2147483647, %v132
    %v165 = vand.u32 2147483647, %v133
    %v166 = vand.u32 2147483647, %v134
    %v167 = vand.u32 2147483647, %v135
    %v168 = vand.u32 2147483647, %v136
    %v169 = vand.u32 2147483647, %v137
    %v170 = vand.u32 2147483647, %v138
    %v171 = vand.u32 2147483647, %v139
    %v172 = vand.u32 2147483647, %v140
    %v173 = vand.u32 2147483647, %v141
    %v174 = vand.u32 2147483647, %v142
    %v175 = vand.u32 2147483647, %v143
    %v176 = vand.u32 2147483647, %v144
    %v177 = vand.u32 2147483647, %v145
    %v178 = vand.u32 2147483647, %v146
    %v179 = vand.u32 2147483647, %v147
    %v180 = vand.u32 2147483647, %v148
    %v181 = vand.u32 2147483647, %v149
    %v182 = vand.u32 2147483647, %v150
    %v183 = vand.u32 2147483647, %v151
    %v184 = vand.u32 2147483647, %v152
    %v185 = vand.u32 2147483647, %v153
    %v186 = vand.u32 2147483647, %v154
    %vm187 = vcmp.lt.f32.partialorder %v155, 1.0
    %vm188 = vcmp.lt.f32.partialorder %v156, 1.0
    %vm189 = vcmp.lt.f32.partialorder %v157, 1.0
    %vm190 = vcmp.lt.f32.partialorder %v158, 1.0
    %vm191 = vcmp.lt.f32.partialorder %v159, 1.0
    %vm192 = vcmp.lt.f32.partialorder %v160, 1.0
    %vm193 = vcmp.lt.f32.partialorder %v161, 1.0
    %vm194 = vcmp.lt.f32.partialorder %v162, 1.0
    %vm195 = vcmp.lt.f32.partialorder %v163, 1.0
    %vm196 = vcmp.lt.f32.partialorder %v164, 1.0
    %vm197 = vcmp.lt.f32.partialorder %v165, 1.0
    %vm198 = vcmp.lt.f32.partialorder %v166, 1.0
    %vm199 = vcmp.lt.f32.partialorder %v167, 1.0
    %vm200 = vcmp.lt.f32.partialorder %v168, 1.0
    %vm201 = vcmp.lt.f32.partialorder %v169, 1.0
    %vm202 = vcmp.lt.f32.partialorder %v170, 1.0
    %vm203 = vcmp.lt.f32.partialorder %v171, 1.0
    %vm204 = vcmp.lt.f32.partialorder %v172, 1.0
    %vm205 = vcmp.lt.f32.partialorder %v173, 1.0
    %vm206 = vcmp.lt.f32.partialorder %v174, 1.0
    %vm207 = vcmp.lt.f32.partialorder %v175, 1.0
    %vm208 = vcmp.lt.f32.partialorder %v176, 1.0
    %vm209 = vcmp.lt.f32.partialorder %v177, 1.0
    %vm210 = vcmp.lt.f32.partialorder %v178, 1.0
    %vm211 = vcmp.lt.f32.partialorder %v179, 1.0
    %vm212 = vcmp.lt.f32.partialorder %v180, 1.0
    %vm213 = vcmp.lt.f32.partialorder %v181, 1.0
    %vm214 = vcmp.lt.f32.partialorder %v182, 1.0
    %vm215 = vcmp.lt.f32.partialorder %v183, 1.0
    %vm216 = vcmp.lt.f32.partialorder %v184, 1.0
    %vm217 = vcmp.lt.f32.partialorder %v185, 1.0
    %vm218 = vcmp.lt.f32.partialorder %v186, 1.0
    %v219 = vmul.f32 %v123, 0.5
    %v220 = vmul.f32 %v124, 0.5
    %v221 = vmul.f32 %v125, 0.5
    %v222 = vmul.f32 %v126, 0.5
    %v223 = vmul.f32 %v127, 0.5
    %v224 = vmul.f32 %v128, 0.5
    %v225 = vmul.f32 %v129, 0.5
    %v226 = vmul.f32 %v130, 0.5
    %v227 = vmul.f32 %v131, 0.5
    %v228 = vmul.f32 %v132, 0.5
    %v229 = vmul.f32 %v133, 0.5
    %v230 = vmul.f32 %v134, 0.5
    %v231 = vmul.f32 %v135, 0.5
    %v232 = vmul.f32 %v136, 0.5
    %v233 = vmul.f32 %v137, 0.5
    %v234 = vmul.f32 %v138, 0.5
    %v235 = vmul.f32 %v139, 0.5
    %v236 = vmul.f32 %v140, 0.5
    %v237 = vmul.f32 %v141, 0.5
    %v238 = vmul.f32 %v142, 0.5
    %v239 = vmul.f32 %v143, 0.5
    %v240 = vmul.f32 %v144, 0.5
    %v241 = vmul.f32 %v145, 0.5
    %v242 = vmul.f32 %v146, 0.5
    %v243 = vmul.f32 %v147, 0.5
    %v244 = vmul.f32 %v148, 0.5
    %v245 = vmul.f32 %v149, 0.5
    %v246 = vmul.f32 %v150, 0.5
    %v247 = vmul.f32 %v151, 0.5
    %v248 = vmul.f32 %v152, 0.5
    %v249 = vmul.f32 %v153, 0.5
    %v250 = vmul.f32 %v154, 0.5
    %v251 = vmul.f32 %v219, %v123
    %v252 = vmul.f32 %v220, %v124
    %v253 = vmul.f32 %v221, %v125
    %v254 = vmul.f32 %v222, %v126
    %v255 = vmul.f32 %v223, %v127
    %v256 = vmul.f32 %v224, %v128
    %v257 = vmul.f32 %v225, %v129
    %v258 = vmul.f32 %v226, %v130
    %v259 = vmul.f32 %v227, %v131
    %v260 = vmul.f32 %v228, %v132
    %v261 = vmul.f32 %v229, %v133
    %v262 = vmul.f32 %v230, %v134
    %v263 = vmul.f32 %v231, %v135
    %v264 = vmul.f32 %v232, %v136
    %v265 = vmul.f32 %v233, %v137
    %v266 = vmul.f32 %v234, %v138
    %v267 = vmul.f32 %v235, %v139
    %v268 = vmul.f32 %v236, %v140
    %v269 = vmul.f32 %v237, %v141
    %v270 = vmul.f32 %v238, %v142
    %v271 = vmul.f32 %v239, %v143
    %v272 = vmul.f32 %v240, %v144
    %v273 = vmul.f32 %v241, %v145
    %v274 = vmul.f32 %v242, %v146
    %v275 = vmul.f32 %v243, %v147
    %v276 = vmul.f32 %v244, %v148
    %v277 = vmul.f32 %v245, %v149
    %v278 = vmul.f32 %v246, %v150
    %v279 = vmul.f32 %v247, %v151
    %v280 = vmul.f32 %v248, %v152
    %v281 = vmul.f32 %v249, %v153
    %v282 = vmul.f32 %v250, %v154
    %v283 = vsub.f32 %v155, 0.5
    %v284 = vsub.f32 %v156, 0.5
    %v285 = vsub.f32 %v157, 0.5
    %v286 = vsub.f32 %v158, 0.5
    %v287 = vsub.f32 %v159, 0.5
    %v288 = vsub.f32 %v160, 0.5
    %v289 = vsub.f32 %v161, 0.5
    %v290 = vsub.f32 %v162, 0.5
    %v291 = vsub.f32 %v163, 0.5
    %v292 = vsub.f32 %v164, 0.5
    %v293 = vsub.f32 %v165, 0.5
    %v294 = vsub.f32 %v166, 0.5
    %v295 = vsub.f32 %v167, 0.5
    %v296 = vsub.f32 %v168, 0.5
    %v297 = vsub.f32 %v169, 0.5
    %v298 = vsub.f32 %v170, 0.5
    %v299 = vsub.f32 %v171, 0.5
    %v300 = vsub.f32 %v172, 0.5
    %v301 = vsub.f32 %v173, 0.5
    %v302 = vsub.f32 %v174, 0.5
    %v303 = vsub.f32 %v175, 0.5
    %v304 = vsub.f32 %v176, 0.5
    %v305 = vsub.f32 %v177, 0.5
    %v306 = vsub.f32 %v178, 0.5
    %v307 = vsub.f32 %v179, 0.5
    %v308 = vsub.f32 %v180, 0.5
    %v309 = vsub.f32 %v181, 0.5
    %v310 = vsub.f32 %v182, 0.5
    %v311 = vsub.f32 %v183, 0.5
    %v312 = vsub.f32 %v184, 0.5
    %v313 = vsub.f32 %v185, 0.5
    %v314 = vsub.f32 %v186, 0.5
    %v315 = vsel %vm187, %v251, %v283
    %v316 = vsel %vm188, %v252, %v284
    %v317 = vsel %vm189, %v253, %v285
    %v318 = vsel %vm190, %v254, %v286
    %v319 = vsel %vm191, %v255, %v287
    %v320 = vsel %vm192, %v256, %v288
    %v321 = vsel %vm193, %v257, %v289
    %v322 = vsel %vm194, %v258, %v290
    %v323 = vsel %vm195, %v259, %v291
    %v324 = vsel %vm196, %v260, %v292
    %v325 = vsel %vm197, %v261, %v293
    %v326 = vsel %vm198, %v262, %v294
    %v327 = vsel %vm199, %v263, %v295
    %v328 = vsel %vm200, %v264, %v296
    %v329 = vsel %vm201, %v265, %v297
    %v330 = vsel %vm202, %v266, %v298
    %v331 = vsel %vm203, %v267, %v299
    %v332 = vsel %vm204, %v268, %v300
    %v333 = vsel %vm205, %v269, %v301
    %v334 = vsel %vm206, %v270, %v302
    %v335 = vsel %vm207, %v271, %v303
    %v336 = vsel %vm208, %v272, %v304
    %v337 = vsel %vm209, %v273, %v305
    %v338 = vsel %vm210, %v274, %v306
    %v339 = vsel %vm211, %v275, %v307
    %v340 = vsel %vm212, %v276, %v308
    %v341 = vsel %vm213, %v277, %v309
    %v342 = vsel %vm214, %v278, %v310
    %v343 = vsel %vm215, %v279, %v311
    %v344 = vsel %vm216, %v280, %v312
    %v345 = vsel %vm217, %v281, %v313
    %v346 = vsel %vm218, %v282, %v314
    %348 = vset.pattern.permute.xlu0 0
    %349 = vperm.xlu0 %348, %v27
    %v350 = vpop.permute.xlu0 %349
    %353 = vset.pattern.permute.xlu0 0
    %354 = vperm.xlu0 %353, %v28
    %v355 = vpop.permute.xlu0 %354
    %358 = vset.pattern.permute.xlu0 0
    %359 = vperm.xlu0 %358, %v29
    %v360 = vpop.permute.xlu0 %359
    %363 = vset.pattern.permute.xlu0 0
    %364 = vperm.xlu0 %363, %v30
    %v365 = vpop.permute.xlu0 %364
    %368 = vset.pattern.permute.xlu0 0
    %369 = vperm.xlu0 %368, %v31
    %v370 = vpop.permute.xlu0 %369
    %373 = vset.pattern.permute.xlu0 0
    %374 = vperm.xlu0 %373, %v32
    %v375 = vpop.permute.xlu0 %374
    %378 = vset.pattern.permute.xlu0 0
    %379 = vperm.xlu0 %378, %v33
    %v380 = vpop.permute.xlu0 %379
    %383 = vset.pattern.permute.xlu0 0
    %384 = vperm.xlu0 %383, %v34
    %v385 = vpop.permute.xlu0 %384
    %388 = vset.pattern.permute.xlu0 0
    %389 = vperm.xlu0 %388, %v35
    %v390 = vpop.permute.xlu0 %389
    %393 = vset.pattern.permute.xlu0 0
    %394 = vperm.xlu0 %393, %v36
    %v395 = vpop.permute.xlu0 %394
    %398 = vset.pattern.permute.xlu0 0
    %399 = vperm.xlu0 %398, %v37
    %v400 = vpop.permute.xlu0 %399
    %403 = vset.pattern.permute.xlu0 0
    %404 = vperm.xlu0 %403, %v38
    %v405 = vpop.permute.xlu0 %404
    %408 = vset.pattern.permute.xlu0 0
    %409 = vperm.xlu0 %408, %v39
    %v410 = vpop.permute.xlu0 %409
    %413 = vset.pattern.permute.xlu0 0
    %414 = vperm.xlu0 %413, %v40
    %v415 = vpop.permute.xlu0 %414
    %418 = vset.pattern.permute.xlu0 0
    %419 = vperm.xlu0 %418, %v41
    %v420 = vpop.permute.xlu0 %419
    %423 = vset.pattern.permute.xlu0 0
    %424 = vperm.xlu0 %423, %v42
    %v425 = vpop.permute.xlu0 %424
    %428 = vset.pattern.permute.xlu0 0
    %429 = vperm.xlu0 %428, %v43
    %v430 = vpop.permute.xlu0 %429
    %433 = vset.pattern.permute.xlu0 0
    %434 = vperm.xlu0 %433, %v44
    %v435 = vpop.permute.xlu0 %434
    %438 = vset.pattern.permute.xlu0 0
    %439 = vperm.xlu0 %438, %v45
    %v440 = vpop.permute.xlu0 %439
    %443 = vset.pattern.permute.xlu0 0
    %444 = vperm.xlu0 %443, %v46
    %v445 = vpop.permute.xlu0 %444
    %448 = vset.pattern.permute.xlu0 0
    %449 = vperm.xlu0 %448, %v47
    %v450 = vpop.permute.xlu0 %449
    %453 = vset.pattern.permute.xlu0 0
    %454 = vperm.xlu0 %453, %v48
    %v455 = vpop.permute.xlu0 %454
    %458 = vset.pattern.permute.xlu0 0
    %459 = vperm.xlu0 %458, %v49
    %v460 = vpop.permute.xlu0 %459
    %463 = vset.pattern.permute.xlu0 0
    %464 = vperm.xlu0 %463, %v50
    %v465 = vpop.permute.xlu0 %464
    %468 = vset.pattern.permute.xlu0 0
    %469 = vperm.xlu0 %468, %v51
    %v470 = vpop.permute.xlu0 %469
    %473 = vset.pattern.permute.xlu0 0
    %474 = vperm.xlu0 %473, %v52
    %v475 = vpop.permute.xlu0 %474
    %478 = vset.pattern.permute.xlu0 0
    %479 = vperm.xlu0 %478, %v53
    %v480 = vpop.permute.xlu0 %479
    %483 = vset.pattern.permute.xlu0 0
    %484 = vperm.xlu0 %483, %v54
    %v485 = vpop.permute.xlu0 %484
    %488 = vset.pattern.permute.xlu0 0
    %489 = vperm.xlu0 %488, %v55
    %v490 = vpop.permute.xlu0 %489
    %493 = vset.pattern.permute.xlu0 0
    %494 = vperm.xlu0 %493, %v56
    %v495 = vpop.permute.xlu0 %494
    %498 = vset.pattern.permute.xlu0 0
    %499 = vperm.xlu0 %498, %v57
    %v500 = vpop.permute.xlu0 %499
    %503 = vset.pattern.permute.xlu0 0
    %504 = vperm.xlu0 %503, %v58
    %v505 = vpop.permute.xlu0 %504
    %v507 = vmul.f32 %v315, %v350
    %v508 = vmul.f32 %v316, %v355
    %v509 = vmul.f32 %v317, %v360
    %v510 = vmul.f32 %v318, %v365
    %v511 = vmul.f32 %v319, %v370
    %v512 = vmul.f32 %v320, %v375
    %v513 = vmul.f32 %v321, %v380
    %v514 = vmul.f32 %v322, %v385
    %v515 = vmul.f32 %v323, %v390
    %v516 = vmul.f32 %v324, %v395
    %v517 = vmul.f32 %v325, %v400
    %v518 = vmul.f32 %v326, %v405
    %v519 = vmul.f32 %v327, %v410
    %v520 = vmul.f32 %v328, %v415
    %v521 = vmul.f32 %v329, %v420
    %v522 = vmul.f32 %v330, %v425
    %v523 = vmul.f32 %v331, %v430
    %v524 = vmul.f32 %v332, %v435
    %v525 = vmul.f32 %v333, %v440
    %v526 = vmul.f32 %v334, %v445
    %v527 = vmul.f32 %v335, %v450
    %v528 = vmul.f32 %v336, %v455
    %v529 = vmul.f32 %v337, %v460
    %v530 = vmul.f32 %v338, %v465
    %v531 = vmul.f32 %v339, %v470
    %v532 = vmul.f32 %v340, %v475
    %v533 = vmul.f32 %v341, %v480
    %v534 = vmul.f32 %v342, %v485
    %v535 = vmul.f32 %v343, %v490
    %v536 = vmul.f32 %v344, %v495
    %v537 = vmul.f32 %v345, %v500
    %v538 = vmul.f32 %v346, %v505
    %vm539 = vcmask 31744
    %v540 = vsel %vm539, %v507, 0.0
    %v541 = vsel %vm539, %v508, 0.0
    %v542 = vadd.f32 %v540, %v541
    %v543 = vsel %vm539, %v509, 0.0
    %v544 = vadd.f32 %v542, %v543
    %v545 = vsel %vm539, %v510, 0.0
    %v546 = vadd.f32 %v544, %v545
    %v547 = vsel %vm539, %v511, 0.0
    %v548 = vadd.f32 %v546, %v547
    %v549 = vsel %vm539, %v512, 0.0
    %v550 = vadd.f32 %v548, %v549
    %v551 = vsel %vm539, %v513, 0.0
    %v552 = vadd.f32 %v550, %v551
    %v553 = vsel %vm539, %v514, 0.0
    %v554 = vadd.f32 %v552, %v553
    %v555 = vsel %vm539, %v515, 0.0
    %v556 = vadd.f32 %v554, %v555
    %v557 = vsel %vm539, %v516, 0.0
    %v558 = vadd.f32 %v556, %v557
    %v559 = vsel %vm539, %v517, 0.0
    %v560 = vadd.f32 %v558, %v559
    %v561 = vsel %vm539, %v518, 0.0
    %v562 = vadd.f32 %v560, %v561
    %v563 = vsel %vm539, %v519, 0.0
    %v564 = vadd.f32 %v562, %v563
    %v565 = vsel %vm539, %v520, 0.0
    %v566 = vadd.f32 %v564, %v565
    %v567 = vsel %vm539, %v521, 0.0
    %v568 = vadd.f32 %v566, %v567
    %v569 = vsel %vm539, %v522, 0.0
    %v570 = vadd.f32 %v568, %v569
    %v571 = vsel %vm539, %v523, 0.0
    %v572 = vadd.f32 %v570, %v571
    %v573 = vsel %vm539, %v524, 0.0
    %v574 = vadd.f32 %v572, %v573
    %v575 = vsel %vm539, %v525, 0.0
    %v576 = vadd.f32 %v574, %v575
    %v577 = vsel %vm539, %v526, 0.0
    %v578 = vadd.f32 %v576, %v577
    %v579 = vsel %vm539, %v527, 0.0
    %v580 = vadd.f32 %v578, %v579
    %v581 = vsel %vm539, %v528, 0.0
    %v582 = vadd.f32 %v580, %v581
    %v583 = vsel %vm539, %v529, 0.0
    %v584 = vadd.f32 %v582, %v583
    %v585 = vsel %vm539, %v530, 0.0
    %v586 = vadd.f32 %v584, %v585
    %v587 = vsel %vm539, %v531, 0.0
    %v588 = vadd.f32 %v586, %v587
    %v589 = vsel %vm539, %v532, 0.0
    %v590 = vadd.f32 %v588, %v589
    %v591 = vsel %vm539, %v533, 0.0
    %v592 = vadd.f32 %v590, %v591
    %v593 = vsel %vm539, %v534, 0.0
    %v594 = vadd.f32 %v592, %v593
    %v595 = vsel %vm539, %v535, 0.0
    %v596 = vadd.f32 %v594, %v595
    %v597 = vsel %vm539, %v536, 0.0
    %v598 = vadd.f32 %v596, %v597
    %v599 = vsel %vm539, %v537, 0.0
    %v600 = vadd.f32 %v598, %v599
    %v601 = vsel %vm539, %v538, 0.0
    %v602 = vadd.f32 %v600, %v601
    %603 = vadd.xlane.f32.xlu0 %v602
    %v604 = vpop.xlane.xlu0 %603
    %v605 = vrot.slane %v604, 4
    %v606 = vadd.f32 %v604, %v605
    %v607 = vrot.slane %v606, 2
    %v608 = vadd.f32 %v606, %v607
    %v609 = vrot.slane %v608, 1
    %v610 = vadd.f32 %v608, %v609
    %s611 = vtos %v610
    %v612 = vld [vmem:[%s2] sm:$0xff]
    %v613 = vld [vmem:[%s2 + $0x8] sm:$0xff]
    %v614 = vld [vmem:[%s2 + $0x10] sm:$0xff]
    %v615 = vld [vmem:[%s2 + $0x18] sm:$0xff]
    %v616 = vld [vmem:[%s2 + $0x20] sm:$0xff]
    %v617 = vld [vmem:[%s2 + $0x28] sm:$0xff]
    %v618 = vld [vmem:[%s2 + $0x30] sm:$0xff]
    %v619 = vld [vmem:[%s2 + $0x38] sm:$0xff]
    %v620 = vld [vmem:[%s2 + $0x40] sm:$0xff]
    %v621 = vld [vmem:[%s2 + $0x48] sm:$0xff]
    %v622 = vld [vmem:[%s2 + $0x50] sm:$0xff]
    %v623 = vld [vmem:[%s2 + $0x58] sm:$0xff]
    %v624 = vld [vmem:[%s2 + $0x60] sm:$0xff]
    %v625 = vld [vmem:[%s2 + $0x68] sm:$0xff]
    %v626 = vld [vmem:[%s2 + $0x70] sm:$0xff]
    %v627 = vld [vmem:[%s2 + $0x78] sm:$0xff]
    %v628 = vld [vmem:[%s2 + $0x80] sm:$0xff]
    %v629 = vld [vmem:[%s2 + $0x88] sm:$0xff]
    %v630 = vld [vmem:[%s2 + $0x90] sm:$0xff]
    %v631 = vld [vmem:[%s2 + $0x98] sm:$0xff]
    %v632 = vld [vmem:[%s2 + $0xa0] sm:$0xff]
    %v633 = vld [vmem:[%s2 + $0xa8] sm:$0xff]
    %v634 = vld [vmem:[%s2 + $0xb0] sm:$0xff]
    %v635 = vld [vmem:[%s2 + $0xb8] sm:$0xff]
    %v636 = vld [vmem:[%s2 + $0xc0] sm:$0xff]
    %v637 = vld [vmem:[%s2 + $0xc8] sm:$0xff]
    %v638 = vld [vmem:[%s2 + $0xd0] sm:$0xff]
    %v639 = vld [vmem:[%s2 + $0xd8] sm:$0xff]
    %v640 = vld [vmem:[%s2 + $0xe0] sm:$0xff]
    %v641 = vld [vmem:[%s2 + $0xe8] sm:$0xff]
    %v642 = vld [vmem:[%s2 + $0xf0] sm:$0xff]
    %v643 = vld [vmem:[%s2 + $0xf8] sm:$0xff]
    %v644 = vld [vmem:[%s3] sm:$0xff]
    %v645 = vld [vmem:[%s3 + $0x8] sm:$0xff]
    %v646 = vld [vmem:[%s3 + $0x10] sm:$0xff]
    %v647 = vld [vmem:[%s3 + $0x18] sm:$0xff]
    %v648 = vld [vmem:[%s3 + $0x20] sm:$0xff]
    %v649 = vld [vmem:[%s3 + $0x28] sm:$0xff]
    %v650 = vld [vmem:[%s3 + $0x30] sm:$0xff]
    %v651 = vld [vmem:[%s3 + $0x38] sm:$0xff]
    %v652 = vld [vmem:[%s3 + $0x40] sm:$0xff]
    %v653 = vld [vmem:[%s3 + $0x48] sm:$0xff]
    %v654 = vld [vmem:[%s3 + $0x50] sm:$0xff]
    %v655 = vld [vmem:[%s3 + $0x58] sm:$0xff]
    %v656 = vld [vmem:[%s3 + $0x60] sm:$0xff]
    %v657 = vld [vmem:[%s3 + $0x68] sm:$0xff]
    %v658 = vld [vmem:[%s3 + $0x70] sm:$0xff]
    %v659 = vld [vmem:[%s3 + $0x78] sm:$0xff]
    %v660 = vld [vmem:[%s3 + $0x80] sm:$0xff]
    %v661 = vld [vmem:[%s3 + $0x88] sm:$0xff]
    %v662 = vld [vmem:[%s3 + $0x90] sm:$0xff]
    %v663 = vld [vmem:[%s3 + $0x98] sm:$0xff]
    %v664 = vld [vmem:[%s3 + $0xa0] sm:$0xff]
    %v665 = vld [vmem:[%s3 + $0xa8] sm:$0xff]
    %v666 = vld [vmem:[%s3 + $0xb0] sm:$0xff]
    %v667 = vld [vmem:[%s3 + $0xb8] sm:$0xff]
    %v668 = vld [vmem:[%s3 + $0xc0] sm:$0xff]
    %v669 = vld [vmem:[%s3 + $0xc8] sm:$0xff]
    %v670 = vld [vmem:[%s3 + $0xd0] sm:$0xff]
    %v671 = vld [vmem:[%s3 + $0xd8] sm:$0xff]
    %v672 = vld [vmem:[%s3 + $0xe0] sm:$0xff]
    %v673 = vld [vmem:[%s3 + $0xe8] sm:$0xff]
    %v674 = vld [vmem:[%s3 + $0xf0] sm:$0xff]
    %v675 = vld [vmem:[%s3 + $0xf8] sm:$0xff]
    %v676 = vsub.f32 %v612, %v644
    %v677 = vsub.f32 %v613, %v645
    %v678 = vsub.f32 %v614, %v646
    %v679 = vsub.f32 %v615, %v647
    %v680 = vsub.f32 %v616, %v648
    %v681 = vsub.f32 %v617, %v649
    %v682 = vsub.f32 %v618, %v650
    %v683 = vsub.f32 %v619, %v651
    %v684 = vsub.f32 %v620, %v652
    %v685 = vsub.f32 %v621, %v653
    %v686 = vsub.f32 %v622, %v654
    %v687 = vsub.f32 %v623, %v655
    %v688 = vsub.f32 %v624, %v656
    %v689 = vsub.f32 %v625, %v657
    %v690 = vsub.f32 %v626, %v658
    %v691 = vsub.f32 %v627, %v659
    %v692 = vsub.f32 %v628, %v660
    %v693 = vsub.f32 %v629, %v661
    %v694 = vsub.f32 %v630, %v662
    %v695 = vsub.f32 %v631, %v663
    %v696 = vsub.f32 %v632, %v664
    %v697 = vsub.f32 %v633, %v665
    %v698 = vsub.f32 %v634, %v666
    %v699 = vsub.f32 %v635, %v667
    %v700 = vsub.f32 %v636, %v668
    %v701 = vsub.f32 %v637, %v669
    %v702 = vsub.f32 %v638, %v670
    %v703 = vsub.f32 %v639, %v671
    %v704 = vsub.f32 %v640, %v672
    %v705 = vsub.f32 %v641, %v673
    %v706 = vsub.f32 %v642, %v674
    %v707 = vsub.f32 %v643, %v675
    %v708 = vmul.f32 %v676, %v676
    %v709 = vmul.f32 %v677, %v677
    %v710 = vmul.f32 %v678, %v678
    %v711 = vmul.f32 %v679, %v679
    %v712 = vmul.f32 %v680, %v680
    %v713 = vmul.f32 %v681, %v681
    %v714 = vmul.f32 %v682, %v682
    %v715 = vmul.f32 %v683, %v683
    %v716 = vmul.f32 %v684, %v684
    %v717 = vmul.f32 %v685, %v685
    %v718 = vmul.f32 %v686, %v686
    %v719 = vmul.f32 %v687, %v687
    %v720 = vmul.f32 %v688, %v688
    %v721 = vmul.f32 %v689, %v689
    %v722 = vmul.f32 %v690, %v690
    %v723 = vmul.f32 %v691, %v691
    %v724 = vmul.f32 %v692, %v692
    %v725 = vmul.f32 %v693, %v693
    %v726 = vmul.f32 %v694, %v694
    %v727 = vmul.f32 %v695, %v695
    %v728 = vmul.f32 %v696, %v696
    %v729 = vmul.f32 %v697, %v697
    %v730 = vmul.f32 %v698, %v698
    %v731 = vmul.f32 %v699, %v699
    %v732 = vmul.f32 %v700, %v700
    %v733 = vmul.f32 %v701, %v701
    %v734 = vmul.f32 %v702, %v702
    %v735 = vmul.f32 %v703, %v703
    %v736 = vmul.f32 %v704, %v704
    %v737 = vmul.f32 %v705, %v705
    %v738 = vmul.f32 %v706, %v706
    %v739 = vmul.f32 %v707, %v707
    %v740 = vmul.f32 %v708, %v350
    %v741 = vmul.f32 %v709, %v355
    %v742 = vmul.f32 %v710, %v360
    %v743 = vmul.f32 %v711, %v365
    %v744 = vmul.f32 %v712, %v370
    %v745 = vmul.f32 %v713, %v375
    %v746 = vmul.f32 %v714, %v380
    %v747 = vmul.f32 %v715, %v385
    %v748 = vmul.f32 %v716, %v390
    %v749 = vmul.f32 %v717, %v395
    %v750 = vmul.f32 %v718, %v400
    %v751 = vmul.f32 %v719, %v405
    %v752 = vmul.f32 %v720, %v410
    %v753 = vmul.f32 %v721, %v415
    %v754 = vmul.f32 %v722, %v420
    %v755 = vmul.f32 %v723, %v425
    %v756 = vmul.f32 %v724, %v430
    %v757 = vmul.f32 %v725, %v435
    %v758 = vmul.f32 %v726, %v440
    %v759 = vmul.f32 %v727, %v445
    %v760 = vmul.f32 %v728, %v450
    %v761 = vmul.f32 %v729, %v455
    %v762 = vmul.f32 %v730, %v460
    %v763 = vmul.f32 %v731, %v465
    %v764 = vmul.f32 %v732, %v470
    %v765 = vmul.f32 %v733, %v475
    %v766 = vmul.f32 %v734, %v480
    %v767 = vmul.f32 %v735, %v485
    %v768 = vmul.f32 %v736, %v490
    %v769 = vmul.f32 %v737, %v495
    %v770 = vmul.f32 %v738, %v500
    %v771 = vmul.f32 %v739, %v505
    %vm772 = vcmask 80896
    %v773 = vsel %vm772, %v740, 0.0
    %v774 = vsel %vm772, %v741, 0.0
    %v775 = vadd.f32 %v773, %v774
    %v776 = vsel %vm772, %v742, 0.0
    %v777 = vadd.f32 %v775, %v776
    %v778 = vsel %vm772, %v743, 0.0
    %v779 = vadd.f32 %v777, %v778
    %v780 = vsel %vm772, %v744, 0.0
    %v781 = vadd.f32 %v779, %v780
    %v782 = vsel %vm772, %v745, 0.0
    %v783 = vadd.f32 %v781, %v782
    %v784 = vsel %vm772, %v746, 0.0
    %v785 = vadd.f32 %v783, %v784
    %v786 = vsel %vm772, %v747, 0.0
    %v787 = vadd.f32 %v785, %v786
    %v788 = vsel %vm772, %v748, 0.0
    %v789 = vadd.f32 %v787, %v788
    %v790 = vsel %vm772, %v749, 0.0
    %v791 = vadd.f32 %v789, %v790
    %v792 = vsel %vm772, %v750, 0.0
    %v793 = vadd.f32 %v791, %v792
    %v794 = vsel %vm772, %v751, 0.0
    %v795 = vadd.f32 %v793, %v794
    %v796 = vsel %vm772, %v752, 0.0
    %v797 = vadd.f32 %v795, %v796
    %v798 = vsel %vm772, %v753, 0.0
    %v799 = vadd.f32 %v797, %v798
    %v800 = vsel %vm772, %v754, 0.0
    %v801 = vadd.f32 %v799, %v800
    %v802 = vsel %vm772, %v755, 0.0
    %v803 = vadd.f32 %v801, %v802
    %v804 = vsel %vm772, %v756, 0.0
    %v805 = vadd.f32 %v803, %v804
    %v806 = vsel %vm772, %v757, 0.0
    %v807 = vadd.f32 %v805, %v806
    %v808 = vsel %vm772, %v758, 0.0
    %v809 = vadd.f32 %v807, %v808
    %v810 = vsel %vm772, %v759, 0.0
    %v811 = vadd.f32 %v809, %v810
    %v812 = vsel %vm772, %v760, 0.0
    %v813 = vadd.f32 %v811, %v812
    %v814 = vsel %vm772, %v761, 0.0
    %v815 = vadd.f32 %v813, %v814
    %v816 = vsel %vm772, %v762, 0.0
    %v817 = vadd.f32 %v815, %v816
    %v818 = vsel %vm772, %v763, 0.0
    %v819 = vadd.f32 %v817, %v818
    %v820 = vsel %vm772, %v764, 0.0
    %v821 = vadd.f32 %v819, %v820
    %v822 = vsel %vm772, %v765, 0.0
    %v823 = vadd.f32 %v821, %v822
    %v824 = vsel %vm772, %v766, 0.0
    %v825 = vadd.f32 %v823, %v824
    %v826 = vsel %vm772, %v767, 0.0
    %v827 = vadd.f32 %v825, %v826
    %v828 = vsel %vm772, %v768, 0.0
    %v829 = vadd.f32 %v827, %v828
    %v830 = vsel %vm772, %v769, 0.0
    %v831 = vadd.f32 %v829, %v830
    %v832 = vsel %vm772, %v770, 0.0
    %v833 = vadd.f32 %v831, %v832
    %v834 = vsel %vm772, %v771, 0.0
    %v835 = vadd.f32 %v833, %v834
    %836 = vadd.xlane.f32.xlu0 %v835
    %v837 = vpop.xlane.xlu0 %836
    %v838 = vrot.slane %v837, 4
    %v839 = vadd.f32 %v837, %v838
    %v840 = vrot.slane %v839, 2
    %v841 = vadd.f32 %v839, %v840
    %v842 = vrot.slane %v841, 1
    %v843 = vadd.f32 %v841, %v842
    %s844 = vtos %v843
    %v845 = vld [vmem:[%s5] sm:$0x3]
    %vm846 = vcmp.gt.s32.totalorder %v845, 0
    %v847 = vsel %vm846, 1, 0
    %v848 = vcvt.s32.f32 %v847
    %v849 = vld [vmem:[%s4] sm:$0x3]
    %s850 = scalar_lea.vmem %s4, 2
    %v851 = vld [vmem:[%s850] sm:$0x3]
    %s852 = scalar_lea.vmem %s4, 4
    %v853 = vld [vmem:[%s852] sm:$0x3]
    %s854 = scalar_lea.vmem %s4, 6
    %v855 = vld [vmem:[%s854] sm:$0x3]
    %v856 = vmax.f32 %v849, %v851
    %v857 = vmax.f32 %v856, %v853
    %v858 = vmax.f32 %v857, %v855
    %v859 = vsub.f32 %v849, %v858
    %v860 = vmul.f32 %v859, 1.442695
    %v861 = vpow.pop %v860
    %v862 = vadd.f32 %v861, 0.0
    %vm863 = vcmp.eq.s32.totalorder %v845, 0
    %v864 = vsel %vm863, %v849, 0.0
    %v865 = vadd.f32 %v864, 0.0
    %v866 = vsub.f32 %v851, %v858
    %v867 = vmul.f32 %v866, 1.442695
    %v868 = vpow.pop %v867
    %v869 = vadd.f32 %v862, %v868
    %vm870 = vcmp.eq.s32.totalorder %v845, 1
    %v871 = vsel %vm870, %v851, 0.0
    %v872 = vadd.f32 %v865, %v871
    %v873 = vsub.f32 %v853, %v858
    %v874 = vmul.f32 %v873, 1.442695
    %v875 = vpow.pop %v874
    %v876 = vadd.f32 %v869, %v875
    %vm877 = vcmp.eq.s32.totalorder %v845, 2
    %v878 = vsel %vm877, %v853, 0.0
    %v879 = vadd.f32 %v872, %v878
    %v880 = vsub.f32 %v855, %v858
    %v881 = vmul.f32 %v880, 1.442695
    %v882 = vpow.pop %v881
    %v883 = vadd.f32 %v876, %v882
    %vm884 = vcmp.eq.s32.totalorder %v845, 3
    %v885 = vsel %vm884, %v855, 0.0
    %v886 = vadd.f32 %v879, %v885
    %v887 = vlog2.pop %v883
    %v888 = vmul.f32 %v887, 0.6931472
    %v889 = vadd.f32 %v888, %v858
    %v890 = vsub.f32 %v889, %v886
    %v891 = vsel %vm846, 0.0, %v890
    %vm892 = vcmask 1041408
    %v893 = vsel %vm892, %v848, 0.0
    %894 = vadd.xlane.f32.xlu0 %v893
    %v895 = vpop.xlane.xlu0 %894
    %v896 = vmul.f32 %v895, 7.0
    %v897 = vmin.f32 %v896, 127.0
    %v898 = vsel %vm892, %v891, -inf
    %899 = vmax.xlane.f32.xlu0 %v898
    %v900 = vpop.xlane.xlu0 %899
    %v901 = vadd.f32 %v900, 0.0
    %v902 = vmul.f32 %v901, 0.5
    %vm903 = vcmp.gt.f32.partialorder %v891, %v902
    %v904 = vsel %vm903, 1.0, 0.0
    %v905 = vsel %vm892, %v904, 0.0
    %906 = vadd.xlane.f32.xlu0 %v905
    %v907 = vpop.xlane.xlu0 %906
    %vm908 = vcmp.ge.f32.partialorder %v907, %v897
    %v909 = vsel %vm908, %v902, 0.0
    %v910 = vsel %vm908, %v900, %v902
    %v911 = vadd.f32 %v909, %v910
    %v912 = vmul.f32 %v911, 0.5
    %vm913 = vcmp.gt.f32.partialorder %v891, %v912
    %v914 = vsel %vm913, 1.0, 0.0
    %v915 = vsel %vm892, %v914, 0.0
    %916 = vadd.xlane.f32.xlu0 %v915
    %v917 = vpop.xlane.xlu0 %916
    %vm918 = vcmp.ge.f32.partialorder %v917, %v897
    %v919 = vsel %vm918, %v912, %v909
    %v920 = vsel %vm918, %v910, %v912
    %v921 = vadd.f32 %v919, %v920
    %v922 = vmul.f32 %v921, 0.5
    %vm923 = vcmp.gt.f32.partialorder %v891, %v922
    %v924 = vsel %vm923, 1.0, 0.0
    %v925 = vsel %vm892, %v924, 0.0
    %926 = vadd.xlane.f32.xlu0 %v925
    %v927 = vpop.xlane.xlu0 %926
    %vm928 = vcmp.ge.f32.partialorder %v927, %v897
    %v929 = vsel %vm928, %v922, %v919
    %v930 = vsel %vm928, %v920, %v922
    %v931 = vadd.f32 %v929, %v930
    %v932 = vmul.f32 %v931, 0.5
    %vm933 = vcmp.gt.f32.partialorder %v891, %v932
    %v934 = vsel %vm933, 1.0, 0.0
    %v935 = vsel %vm892, %v934, 0.0
    %936 = vadd.xlane.f32.xlu0 %v935
    %v937 = vpop.xlane.xlu0 %936
    %vm938 = vcmp.ge.f32.partialorder %v937, %v897
    %v939 = vsel %vm938, %v932, %v929
    %v940 = vsel %vm938, %v930, %v932
    %v941 = vadd.f32 %v939, %v940
    %v942 = vmul.f32 %v941, 0.5
    %vm943 = vcmp.gt.f32.partialorder %v891, %v942
    %v944 = vsel %vm943, 1.0, 0.0
    %v945 = vsel %vm892, %v944, 0.0
    %946 = vadd.xlane.f32.xlu0 %v945
    %v947 = vpop.xlane.xlu0 %946
    %vm948 = vcmp.ge.f32.partialorder %v947, %v897
    %v949 = vsel %vm948, %v942, %v939
    %v950 = vsel %vm948, %v940, %v942
    %v951 = vadd.f32 %v949, %v950
    %v952 = vmul.f32 %v951, 0.5
    %vm953 = vcmp.gt.f32.partialorder %v891, %v952
    %v954 = vsel %vm953, 1.0, 0.0
    %v955 = vsel %vm892, %v954, 0.0
    %956 = vadd.xlane.f32.xlu0 %v955
    %v957 = vpop.xlane.xlu0 %956
    %vm958 = vcmp.ge.f32.partialorder %v957, %v897
    %v959 = vsel %vm958, %v952, %v949
    %v960 = vsel %vm958, %v950, %v952
    %v961 = vadd.f32 %v959, %v960
    %v962 = vmul.f32 %v961, 0.5
    %vm963 = vcmp.gt.f32.partialorder %v891, %v962
    %v964 = vsel %vm963, 1.0, 0.0
    %v965 = vsel %vm892, %v964, 0.0
    %966 = vadd.xlane.f32.xlu0 %v965
    %v967 = vpop.xlane.xlu0 %966
    %vm968 = vcmp.ge.f32.partialorder %v967, %v897
    %v969 = vsel %vm968, %v962, %v959
    %v970 = vsel %vm968, %v960, %v962
    %v971 = vadd.f32 %v969, %v970
    %v972 = vmul.f32 %v971, 0.5
    %vm973 = vcmp.gt.f32.partialorder %v891, %v972
    %v974 = vsel %vm973, 1.0, 0.0
    %v975 = vsel %vm892, %v974, 0.0
    %976 = vadd.xlane.f32.xlu0 %v975
    %v977 = vpop.xlane.xlu0 %976
    %vm978 = vcmp.ge.f32.partialorder %v977, %v897
    %v979 = vsel %vm978, %v972, %v969
    %v980 = vsel %vm978, %v970, %v972
    %v981 = vadd.f32 %v979, %v980
    %v982 = vmul.f32 %v981, 0.5
    %vm983 = vcmp.gt.f32.partialorder %v891, %v982
    %v984 = vsel %vm983, 1.0, 0.0
    %v985 = vsel %vm892, %v984, 0.0
    %986 = vadd.xlane.f32.xlu0 %v985
    %v987 = vpop.xlane.xlu0 %986
    %vm988 = vcmp.ge.f32.partialorder %v987, %v897
    %v989 = vsel %vm988, %v982, %v979
    %v990 = vsel %vm988, %v980, %v982
    %v991 = vadd.f32 %v989, %v990
    %v992 = vmul.f32 %v991, 0.5
    %vm993 = vcmp.gt.f32.partialorder %v891, %v992
    %v994 = vsel %vm993, 1.0, 0.0
    %v995 = vsel %vm892, %v994, 0.0
    %996 = vadd.xlane.f32.xlu0 %v995
    %v997 = vpop.xlane.xlu0 %996
    %vm998 = vcmp.ge.f32.partialorder %v997, %v897
    %v999 = vsel %vm998, %v992, %v989
    %v1000 = vsel %vm998, %v990, %v992
    %v1001 = vadd.f32 %v999, %v1000
    %v1002 = vmul.f32 %v1001, 0.5
    %vm1003 = vcmp.gt.f32.partialorder %v891, %v1002
    %v1004 = vsel %vm1003, 1.0, 0.0
    %v1005 = vsel %vm892, %v1004, 0.0
    %1006 = vadd.xlane.f32.xlu0 %v1005
    %v1007 = vpop.xlane.xlu0 %1006
    %vm1008 = vcmp.ge.f32.partialorder %v1007, %v897
    %v1009 = vsel %vm1008, %v1002, %v999
    %v1010 = vsel %vm1008, %v1000, %v1002
    %v1011 = vadd.f32 %v1009, %v1010
    %v1012 = vmul.f32 %v1011, 0.5
    %vm1013 = vcmp.gt.f32.partialorder %v891, %v1012
    %v1014 = vsel %vm1013, 1.0, 0.0
    %v1015 = vsel %vm892, %v1014, 0.0
    %1016 = vadd.xlane.f32.xlu0 %v1015
    %v1017 = vpop.xlane.xlu0 %1016
    %vm1018 = vcmp.ge.f32.partialorder %v1017, %v897
    %v1019 = vsel %vm1018, %v1012, %v1009
    %v1020 = vsel %vm1018, %v1010, %v1012
    %v1021 = vadd.f32 %v1019, %v1020
    %v1022 = vmul.f32 %v1021, 0.5
    %vm1023 = vcmp.gt.f32.partialorder %v891, %v1022
    %v1024 = vsel %vm1023, 1.0, 0.0
    %v1025 = vsel %vm892, %v1024, 0.0
    %1026 = vadd.xlane.f32.xlu0 %v1025
    %v1027 = vpop.xlane.xlu0 %1026
    %vm1028 = vcmp.ge.f32.partialorder %v1027, %v897
    %v1029 = vsel %vm1028, %v1022, %v1019
    %v1030 = vsel %vm1028, %v1020, %v1022
    %v1031 = vadd.f32 %v1029, %v1030
    %v1032 = vmul.f32 %v1031, 0.5
    %vm1033 = vcmp.gt.f32.partialorder %v891, %v1032
    %v1034 = vsel %vm1033, 1.0, 0.0
    %v1035 = vsel %vm892, %v1034, 0.0
    %1036 = vadd.xlane.f32.xlu0 %v1035
    %v1037 = vpop.xlane.xlu0 %1036
    %vm1038 = vcmp.ge.f32.partialorder %v1037, %v897
    %v1039 = vsel %vm1038, %v1032, %v1029
    %v1040 = vsel %vm1038, %v1030, %v1032
    %v1041 = vadd.f32 %v1039, %v1040
    %v1042 = vmul.f32 %v1041, 0.5
    %vm1043 = vcmp.gt.f32.partialorder %v891, %v1042
    %v1044 = vsel %vm1043, 1.0, 0.0
    %v1045 = vsel %vm892, %v1044, 0.0
    %1046 = vadd.xlane.f32.xlu0 %v1045
    %v1047 = vpop.xlane.xlu0 %1046
    %vm1048 = vcmp.ge.f32.partialorder %v1047, %v897
    %v1049 = vsel %vm1048, %v1042, %v1039
    %v1050 = vsel %vm1048, %v1040, %v1042
    %v1051 = vadd.f32 %v1049, %v1050
    %v1052 = vmul.f32 %v1051, 0.5
    %vm1053 = vcmp.gt.f32.partialorder %v891, %v1052
    %v1054 = vsel %vm1053, 1.0, 0.0
    %v1055 = vsel %vm892, %v1054, 0.0
    %1056 = vadd.xlane.f32.xlu0 %v1055
    %v1057 = vpop.xlane.xlu0 %1056
    %vm1058 = vcmp.ge.f32.partialorder %v1057, %v897
    %v1059 = vsel %vm1058, %v1052, %v1049
    %v1060 = vsel %vm1058, %v1050, %v1052
    %v1061 = vadd.f32 %v1059, %v1060
    %v1062 = vmul.f32 %v1061, 0.5
    %vm1063 = vcmp.gt.f32.partialorder %v891, %v1062
    %v1064 = vsel %vm1063, 1.0, 0.0
    %v1065 = vsel %vm892, %v1064, 0.0
    %1066 = vadd.xlane.f32.xlu0 %v1065
    %v1067 = vpop.xlane.xlu0 %1066
    %vm1068 = vcmp.ge.f32.partialorder %v1067, %v897
    %v1069 = vsel %vm1068, %v1062, %v1059
    %v1070 = vsel %vm1068, %v1060, %v1062
    %v1071 = vadd.f32 %v1069, %v1070
    %v1072 = vmul.f32 %v1071, 0.5
    %vm1073 = vcmp.gt.f32.partialorder %v891, %v1072
    %v1074 = vsel %vm1073, 1.0, 0.0
    %v1075 = vsel %vm892, %v1074, 0.0
    %1076 = vadd.xlane.f32.xlu0 %v1075
    %v1077 = vpop.xlane.xlu0 %1076
    %vm1078 = vcmp.ge.f32.partialorder %v1077, %v897
    %v1079 = vsel %vm1078, %v1072, %v1069
    %v1080 = vsel %vm1078, %v1070, %v1072
    %v1081 = vadd.f32 %v1079, %v1080
    %v1082 = vmul.f32 %v1081, 0.5
    %vm1083 = vcmp.gt.f32.partialorder %v891, %v1082
    %v1084 = vsel %vm1083, 1.0, 0.0
    %v1085 = vsel %vm892, %v1084, 0.0
    %1086 = vadd.xlane.f32.xlu0 %v1085
    %v1087 = vpop.xlane.xlu0 %1086
    %vm1088 = vcmp.ge.f32.partialorder %v1087, %v897
    %v1089 = vsel %vm1088, %v1082, %v1079
    %v1090 = vsel %vm1088, %v1080, %v1082
    %v1091 = vadd.f32 %v1089, %v1090
    %v1092 = vmul.f32 %v1091, 0.5
    %vm1093 = vcmp.gt.f32.partialorder %v891, %v1092
    %v1094 = vsel %vm1093, 1.0, 0.0
    %v1095 = vsel %vm892, %v1094, 0.0
    %1096 = vadd.xlane.f32.xlu0 %v1095
    %v1097 = vpop.xlane.xlu0 %1096
    %vm1098 = vcmp.ge.f32.partialorder %v1097, %v897
    %v1099 = vsel %vm1098, %v1092, %v1089
    %v1100 = vsel %vm1098, %v1090, %v1092
    %v1101 = vadd.f32 %v1099, %v1100
    %v1102 = vmul.f32 %v1101, 0.5
    %vm1103 = vcmp.gt.f32.partialorder %v891, %v1102
    %v1104 = vsel %vm1103, 1.0, 0.0
    %v1105 = vsel %vm892, %v1104, 0.0
    %1106 = vadd.xlane.f32.xlu0 %v1105
    %v1107 = vpop.xlane.xlu0 %1106
    %vm1108 = vcmp.ge.f32.partialorder %v1107, %v897
    %v1109 = vsel %vm1108, %v1102, %v1099
    %v1110 = vsel %vm1108, %v1100, %v1102
    %v1111 = vadd.f32 %v1109, %v1110
    %v1112 = vmul.f32 %v1111, 0.5
    %vm1113 = vcmp.gt.f32.partialorder %v891, %v1112
    %v1114 = vsel %vm1113, 1.0, 0.0
    %v1115 = vsel %vm892, %v1114, 0.0
    %1116 = vadd.xlane.f32.xlu0 %v1115
    %v1117 = vpop.xlane.xlu0 %1116
    %vm1118 = vcmp.ge.f32.partialorder %v1117, %v897
    %v1119 = vsel %vm1118, %v1112, %v1109
    %v1120 = vsel %vm1118, %v1110, %v1112
    %v1121 = vadd.f32 %v1119, %v1120
    %v1122 = vmul.f32 %v1121, 0.5
    %vm1123 = vcmp.gt.f32.partialorder %v891, %v1122
    %v1124 = vsel %vm1123, 1.0, 0.0
    %v1125 = vsel %vm892, %v1124, 0.0
    %1126 = vadd.xlane.f32.xlu0 %v1125
    %v1127 = vpop.xlane.xlu0 %1126
    %vm1128 = vcmp.ge.f32.partialorder %v1127, %v897
    %v1129 = vsel %vm1128, %v1122, %v1119
    %v1130 = vsel %vm1128, %v1120, %v1122
    %v1131 = vadd.f32 %v1129, %v1130
    %v1132 = vmul.f32 %v1131, 0.5
    %vm1133 = vcmp.gt.f32.partialorder %v891, %v1132
    %v1134 = vsel %vm1133, 1.0, 0.0
    %v1135 = vsel %vm892, %v1134, 0.0
    %1136 = vadd.xlane.f32.xlu0 %v1135
    %v1137 = vpop.xlane.xlu0 %1136
    %vm1138 = vcmp.ge.f32.partialorder %v1137, %v897
    %v1139 = vsel %vm1138, %v1132, %v1129
    %v1140 = vsel %vm1138, %v1130, %v1132
    %v1141 = vadd.f32 %v1139, %v1140
    %v1142 = vmul.f32 %v1141, 0.5
    %vm1143 = vcmp.gt.f32.partialorder %v891, %v1142
    %v1144 = vsel %vm1143, 1.0, 0.0
    %v1145 = vsel %vm892, %v1144, 0.0
    %1146 = vadd.xlane.f32.xlu0 %v1145
    %v1147 = vpop.xlane.xlu0 %1146
    %vm1148 = vcmp.ge.f32.partialorder %v1147, %v897
    %v1149 = vsel %vm1148, %v1142, %v1139
    %v1150 = vsel %vm1148, %v1140, %v1142
    %v1151 = vadd.f32 %v1149, %v1150
    %v1152 = vmul.f32 %v1151, 0.5
    %vm1153 = vcmp.gt.f32.partialorder %v891, %v1152
    %v1154 = vsel %vm1153, 1.0, 0.0
    %v1155 = vsel %vm892, %v1154, 0.0
    %1156 = vadd.xlane.f32.xlu0 %v1155
    %v1157 = vpop.xlane.xlu0 %1156
    %vm1158 = vcmp.ge.f32.partialorder %v1157, %v897
    %v1159 = vsel %vm1158, %v1152, %v1149
    %v1160 = vsel %vm1158, %v1150, %v1152
    %v1161 = vadd.f32 %v1159, %v1160
    %v1162 = vmul.f32 %v1161, 0.5
    %vm1163 = vcmp.gt.f32.partialorder %v891, %v1162
    %v1164 = vsel %vm1163, 1.0, 0.0
    %v1165 = vsel %vm892, %v1164, 0.0
    %1166 = vadd.xlane.f32.xlu0 %v1165
    %v1167 = vpop.xlane.xlu0 %1166
    %vm1168 = vcmp.ge.f32.partialorder %v1167, %v897
    %v1169 = vsel %vm1168, %v1162, %v1159
    %v1170 = vsel %vm1168, %v1160, %v1162
    %v1171 = vadd.f32 %v1169, %v1170
    %v1172 = vmul.f32 %v1171, 0.5
    %vm1173 = vcmp.gt.f32.partialorder %v891, %v1172
    %v1174 = vsel %vm1173, 1.0, 0.0
    %v1175 = vsel %vm892, %v1174, 0.0
    %1176 = vadd.xlane.f32.xlu0 %v1175
    %v1177 = vpop.xlane.xlu0 %1176
    %vm1178 = vcmp.ge.f32.partialorder %v1177, %v897
    %v1179 = vsel %vm1178, %v1172, %v1169
    %v1180 = vsel %vm1178, %v1170, %v1172
    %v1181 = vadd.f32 %v1179, %v1180
    %v1182 = vmul.f32 %v1181, 0.5
    %vm1183 = vcmp.gt.f32.partialorder %v891, %v1182
    %v1184 = vsel %vm1183, 1.0, 0.0
    %v1185 = vsel %vm892, %v1184, 0.0
    %1186 = vadd.xlane.f32.xlu0 %v1185
    %v1187 = vpop.xlane.xlu0 %1186
    %vm1188 = vcmp.ge.f32.partialorder %v1187, %v897
    %v1189 = vsel %vm1188, %v1182, %v1179
    %v1190 = vsel %vm1188, %v1180, %v1182
    %v1191 = vadd.f32 %v1189, %v1190
    %v1192 = vmul.f32 %v1191, 0.5
    %vm1193 = vcmp.gt.f32.partialorder %v891, %v1192
    %v1194 = vsel %vm1193, 1.0, 0.0
    %v1195 = vsel %vm892, %v1194, 0.0
    %1196 = vadd.xlane.f32.xlu0 %v1195
    %v1197 = vpop.xlane.xlu0 %1196
    %vm1198 = vcmp.ge.f32.partialorder %v1197, %v897
    %v1199 = vsel %vm1198, %v1192, %v1189
    %v1200 = vsel %vm1198, %v1190, %v1192
    %v1201 = vadd.f32 %v1199, %v1200
    %v1202 = vmul.f32 %v1201, 0.5
    %vm1203 = vcmp.gt.f32.partialorder %v891, %v1202
    %v1204 = vsel %vm1203, 1.0, 0.0
    %v1205 = vsel %vm892, %v1204, 0.0
    %1206 = vadd.xlane.f32.xlu0 %v1205
    %v1207 = vpop.xlane.xlu0 %1206
    %vm1208 = vcmp.ge.f32.partialorder %v1207, %v897
    %v1209 = vsel %vm1208, %v1202, %v1199
    %v1210 = vsel %vm1208, %v1200, %v1202
    %v1211 = vadd.f32 %v1209, %v1210
    %v1212 = vmul.f32 %v1211, 0.5
    %vm1213 = vcmp.gt.f32.partialorder %v891, %v1212
    %v1214 = vsel %vm1213, 1.0, 0.0
    %v1215 = vsel %vm892, %v1214, 0.0
    %1216 = vadd.xlane.f32.xlu0 %v1215
    %v1217 = vpop.xlane.xlu0 %1216
    %vm1218 = vcmp.ge.f32.partialorder %v1217, %v897
    %v1219 = vsel %vm1218, %v1212, %v1209
    %vm1220 = vcmp.gt.f32.partialorder %v891, %v1219
    %v1221 = vsel %vm1220, 1.0, 0.0
    %v1222 = vsel %vm892, %v1221, 0.0
    %1223 = vadd.xlane.f32.xlu0 %v1222
    %v1224 = vpop.xlane.xlu0 %1223
    %v1225 = vmul.f32 %v891, %v1221
    %v1226 = vsel %vm892, %v1225, 0.0
    %1227 = vadd.xlane.f32.xlu0 %v1226
    %v1228 = vpop.xlane.xlu0 %1227
    %v1229 = vsub.f32 %v897, %v1224
    %v1230 = vmul.f32 %v1229, %v1219
    %v1231 = vadd.f32 %v1228, %v1230
    %v1232 = vmul.f32 %v890, %v848
    %v1233 = vsel %vm892, %v1232, 0.0
    %1234 = vadd.xlane.f32.xlu0 %v1233
    %v1235 = vpop.xlane.xlu0 %1234
    %v1236 = vrot.slane %v1235, 4
    %v1237 = vadd.f32 %v1235, %v1236
    %v1238 = vrot.slane %v1237, 2
    %v1239 = vadd.f32 %v1237, %v1238
    %v1240 = vrot.slane %v1239, 1
    %v1241 = vadd.f32 %v1239, %v1240
    %s1242 = vtos %v1241
    %vm1243 = vcmask 1024
    %v1244 = vsel %vm1243, %v1231, 0.0
    %1245 = vadd.xlane.f32.xlu0 %v1244
    %v1246 = vpop.xlane.xlu0 %1245
    %v1247 = vrot.slane %v1246, 4
    %v1248 = vadd.f32 %v1246, %v1247
    %v1249 = vrot.slane %v1248, 2
    %v1250 = vadd.f32 %v1248, %v1249
    %v1251 = vrot.slane %v1250, 1
    %v1252 = vadd.f32 %v1250, %v1251
    %s1253 = vtos %v1252
    %s1254 = sadd.f32 %s1242, %s1253
    %v1255 = vrot.slane %v895, 4
    %v1256 = vadd.f32 %v895, %v1255
    %v1257 = vrot.slane %v1256, 2
    %v1258 = vadd.f32 %v1256, %v1257
    %v1259 = vrot.slane %v1258, 1
    %v1260 = vadd.f32 %v1258, %v1259
    %s1261 = vtos %v1260
    %v1262 = vlaneseq
    %v1263 = vand.u32 %v1262, 127
    %vm1264 = vcmp.eq.s32.totalorder %v1263, 0
    %v1265 = vstv %s611
    %v1266 = vsel %vm1264, %v1265, 0.0
    %vm1267 = vcmp.eq.s32.totalorder %v1263, 1
    %v1268 = vstv %s1254
    %v1269 = vsel %vm1267, %v1268, 0.0
    %v1270 = vadd.f32 %v1266, %v1269
    %vm1271 = vcmp.eq.s32.totalorder %v1263, 2
    %v1272 = vstv %s844
    %v1273 = vsel %vm1271, %v1272, 0.0
    %v1274 = vadd.f32 %v1270, %v1273
    %vm1275 = vcmp.eq.s32.totalorder %v1263, 3
    %v1276 = vstv %s1261
    %v1277 = vsel %vm1275, %v1276, 0.0
    %v1278 = vadd.f32 %v1274, %v1277
    %1279 = vst [vmem:[#allocation2] sm:$0x1] %v1278
    // Predicated region
    $region30: #{tpu_custom_call.1} parent=1 // pred_check
      _
    $region31: #{tpu_custom_call.1} parent=1 // pred_check_branch
      %1281 = sbr.rel (0) target = $region33
    $region32: #{tpu_custom_call.1} parent=1 // pred_region
      %s1283 = ssub.s32 16, 16
      %1284 = vsyncadd [#allocation3], %s1283
      %s1286 = sshll.u32 [#allocation2], 4
      %s1287 = int_to_ptr.vmem [resolvable:$true] %s1286
      %1289 = dma.vmem_to_hbm [thread:$0]  %s1287, 16, %s7, [#allocation3]
    $region33: #{tpu_custom_call.1} parent=1 // pred_fallthru
      _
    // Predicated region
    $region34: #{tpu_custom_call.1} parent=1 // pred_check
      _
    $region35: #{tpu_custom_call.1} parent=1 // pred_check_branch
      %1291 = sbr.rel (0) target = $region37
    $region36: #{tpu_custom_call.1} parent=1 // pred_region
      %1292 = dma.done [#allocation3], 16
    $region37: #{tpu_custom_call.1} parent=1 // pred_fallthru
      _
    %1293 = vsyncpa [#allocation3], 1

</llo_original>
